<compile_context>
chip_gen: v6e
topology: v6e:2x2x1
jax: 0.10.0
libtpu: 0.0.40
codegen_flags: <defaults>
</compile_context>

<pallas_src>
import functools
import math

import jax
import jax.numpy as jnp
from jax.experimental import pallas as pl
from jax.experimental.pallas import tpu as pltpu


def _transformer_layer_kernel(
    x_ref,      # (Bt*S, C)  flat row slab for Bt batches, input dtype
    wqkv_ref,   # (C, 3C)    fused q/k/v Linear + MHA in_proj (1/sqrt(hd) folded into Q)
    bqkv_ref,   # (1, 3C)    in_proj bias (Q part pre-scaled), f32
    wo_ref,     # (C, C)     out_proj.weight.T
    bo_ref,     # (1, C)     out_proj.bias, f32
    wff_ref,    # (C, C)     fc1.T @ fc2.T folded (no nonlinearity between them)
    out_ref,    # (Bt*S, C)
    *,
    batch_tile: int,
    seq_len: int,
    num_heads: int,
    approx_recip: bool,
):
    m, c = x_ref.shape
    bt, s, h = batch_tile, seq_len, num_heads
    hd = c // h
    f32 = jnp.float32
    cdt = wqkv_ref.dtype            # MXU compute dtype (f32 or bf16), set by fold_params

    xf = x_ref[...]                 # (M, C), input dtype
    xc = xf.astype(cdt)

    # --- fused QKV projection: one (M, C) x (C, 3C) matmul, f32 accumulation.
    #     M = Bt*S rows keep the MXU fed (vs M = S previously). ---
    qkv = jnp.dot(xc, wqkv_ref[...], preferred_element_type=f32) + bqkv_ref[...]  # (M, 3C) f32

    # Leading-dim split only (lane dim untouched) -> per-batch view for attention.
    qkv3 = qkv.reshape(bt, s, 3 * c)                                               # (Bt, S, 3C)

    # --- attention: static loop over heads, batched over the Bt batches of this
    #     tile via 3D einsums; softmax math in f32.  einsum('bqd,bkd->bqk')
    #     contracts the minor dims directly, so no separate K transpose is
    #     materialized in the kernel code. ---
    o_heads = []
    for head in range(h):
        q_h = qkv3[:, :, head * hd:(head + 1) * hd].astype(cdt)                 # (Bt, S, hd)
        k_h = qkv3[:, :, c + head * hd:c + (head + 1) * hd].astype(cdt)
        v_h = qkv3[:, :, 2 * c + head * hd:2 * c + (head + 1) * hd].astype(cdt)

        sc = jnp.einsum("bqd,bkd->bqk", q_h, k_h, preferred_element_type=f32)    # (Bt, S, S)
        sc = sc - jnp.max(sc, axis=-1, keepdims=True)
        p = jnp.exp(sc)
        p = p * pl.reciprocal(jnp.sum(p, axis=-1, keepdims=True), approx=approx_recip)
        o_heads.append(
            jnp.einsum("bqk,bkd->bqd", p.astype(cdt), v_h, preferred_element_type=f32)
        )

    # Merge heads (minor-dim concat) and flatten back to the (M, C) row slab.
    attn = jnp.concatenate(o_heads, axis=-1).reshape(m, c)                       # (M, C) f32

    # --- MHA out_proj (+bias) + residual ---
    r1 = (jnp.dot(attn.astype(cdt), wo_ref[...], preferred_element_type=f32)
          + bo_ref[...] + xf.astype(f32))                                        # (M, C) f32

    # --- fc2(fc1(.)) folded into a single matmul on host, + residual ---
    out = jnp.dot(r1.astype(cdt), wff_ref[...], preferred_element_type=f32) + r1

    out_ref[...] = out.astype(out_ref.dtype)


def fold_params(params, num_heads, compute_dtype=jnp.float32):
    """Host-side algebraic folding.  Call ONCE (outside the per-forward path)."""
    c = params["wq"].shape[0]
    hd = c // num_heads
    scale = 1.0 / math.sqrt(hd)

    win = params["in_proj_weight"]                       # (3C, C)
    wq_f = (params["wq"].T @ win[0:c].T) * scale         # fold 1/sqrt(hd) into Q path
    wk_f = params["wk"].T @ win[c:2 * c].T
    wv_f = params["wv"].T @ win[2 * c:3 * c].T
    w_qkv = jnp.concatenate([wq_f, wk_f, wv_f], axis=1).astype(compute_dtype)    # (C, 3C)

    bias = params["in_proj_bias"]
    b_qkv = jnp.concatenate([bias[0:c] * scale, bias[c:]]).reshape(1, 3 * c).astype(jnp.float32)

    w_o = params["out_proj_weight"].T.astype(compute_dtype)                      # (C, C)
    b_o = params["out_proj_bias"].reshape(1, c).astype(jnp.float32)
    # Valid only because there is no activation between fc1 and fc2 in this module.
    w_ff = (params["fc1"].T @ params["fc2"].T).astype(compute_dtype)             # (C, C)

    return {"w_qkv": w_qkv, "b_qkv": b_qkv, "w_o": w_o, "b_o": b_o, "w_ff": w_ff,
            "num_heads": num_heads}


def _pick_batch_tile(batch, seq, heads, channels):
    """Largest divisor of `batch` with Bt*S ~ 256 rows and a bounded f32 footprint."""
    target_rows = 256
    cap = min(batch, max(1, target_rows // max(seq, 1)))

    def fits(bt):
        scores = bt * heads * seq * seq * 4            # (Bt*H, S, S) f32 score block
        slabs = bt * seq * channels * 4 * 12           # ~12 (Bt*S, C)-sized f32 temps
        return scores <= (4 << 20) and slabs <= (16 << 20)

    for bt in range(cap, 0, -1):
        if batch % bt == 0 and fits(bt):
            return bt
    return 1


def transformer_layer(x, folded, *, batch_first=False):
    """Forward pass.

    x: (S, B, C) when batch_first=False (PyTorch nn.MultiheadAttention convention),
       (B, S, C) when batch_first=True (skips the two activation transposes).
    folded: output of fold_params().
    """
    if batch_first:
        b, s, c = x.shape
        x_bsc = x
    else:
        s, b, c = x.shape
        x_bsc = jnp.transpose(x, (1, 0, 2))

    num_heads = folded["num_heads"]
    bt = _pick_batch_tile(b, s, num_heads, c)
    m = bt * s

    x_flat = x_bsc.reshape(b * s, c)                   # free view: rows grouped by batch
    approx_recip = jnp.dtype(folded["w_qkv"].dtype) != jnp.dtype(jnp.float32)

    kernel = functools.partial(
        _transformer_layer_kernel,
        batch_tile=bt, seq_len=s, num_heads=num_heads, approx_recip=bool(approx_recip),
    )

    # Whole-array VMEM residency for the (grid-invariant) weights/biases: copied in
    # once, not double-buffered by the block pipeline.
    wspec = pl.BlockSpec(memory_space=pltpu.MemorySpace.VMEM)

    grid_spec = pltpu.PrefetchScalarGridSpec(
        num_scalar_prefetch=0,
        grid=(b // bt,),
        in_specs=[
            pl.BlockSpec((m, c), lambda i: (i, 0)),    # activation row slab
            wspec,                                     # fused QKV weight (C, 3C)
            wspec,                                     # fused QKV bias   (1, 3C)
            wspec,                                     # out_proj weight  (C, C)
            wspec,                                     # out_proj bias    (1, C)
            wspec,                                     # folded FFN weight(C, C)
        ],
        out_specs=pl.BlockSpec((m, c), lambda i: (i, 0)),
    )

    out_flat = pl.pallas_call(
        kernel,
        out_shape=jax.ShapeDtypeStruct((b * s, c), x.dtype),
        grid_spec=grid_spec,
        compiler_params=pltpu.CompilerParams(
            dimension_semantics=("parallel",),         # batch-tile grid -> megacore on v7x
            # 40 MiB: <= 63% of v7x's 64 MiB physical VMEM (headroom for compiler
            # scratch), trivially within v5e/v6e's 128 MiB; _pick_batch_tile keeps the
            # per-step working set well under this.
            vmem_limit_bytes=40 * 1024 * 1024,
        ),
    )(x_flat, folded["w_qkv"], folded["b_qkv"], folded["w_o"], folded["b_o"], folded["w_ff"])

    out_bsc = out_flat.reshape(b, s, c)
    return out_bsc if batch_first else jnp.transpose(out_bsc, (1, 0, 2))


def transformer_layer_reference(x, params, num_heads):
    """Pure-JAX, unfused reference with PyTorch semantics (validates the folding)."""
    s, b, c = x.shape
    hd = c // num_heads
    scale = 1.0 / math.sqrt(hd)
    xf = x.reshape(s * b, c)
    q = xf @ params["wq"].T
    k = xf @ params["wk"].T
    v = xf @ params["wv"].T
    win, bin_ = params["in_proj_weight"], params["in_proj_bias"]
    qp = q @ win[:c].T + bin_[:c]
    kp = k @ win[c:2 * c].T + bin_[c:2 * c]
    vp = v @ win[2 * c:].T + bin_[2 * c:]
    qh = qp.reshape(s, b, num_heads, hd).transpose(1, 2, 0, 3) * scale
    kh = kp.reshape(s, b, num_heads, hd).transpose(1, 2, 0, 3)
    vh = vp.reshape(s, b, num_heads, hd).transpose(1, 2, 0, 3)
    sc = jnp.einsum("bhsd,bhtd->bhst", qh, kh)
    p = jax.nn.softmax(sc, axis=-1)
    o = jnp.einsum("bhst,bhtd->bhsd", p, vh)
    o = o.transpose(2, 0, 1, 3).reshape(s * b, c)
    mha = o @ params["out_proj_weight"].T + params["out_proj_bias"]
    r1 = mha + xf
    out = (r1 @ params["fc1"].T) @ params["fc2"].T + r1
    return out.reshape(s, b, c)


def init_params(key, c):
    """Deterministic synthetic parameters (PyTorch (out, in) convention)."""
    ks = jax.random.split(key, 9)
    lim = 1.0 / math.sqrt(c)
    return {
        "wq": jax.random.uniform(ks[0], (c, c), jnp.float32, -lim, lim),
        "wk": jax.random.uniform(ks[1], (c, c), jnp.float32, -lim, lim),
        "wv": jax.random.uniform(ks[2], (c, c), jnp.float32, -lim, lim),
        "in_proj_weight": jax.random.uniform(ks[3], (3 * c, c), jnp.float32, -lim, lim),
        "in_proj_bias": jax.random.uniform(ks[4], (3 * c,), jnp.float32, -lim, lim),
        "out_proj_weight": jax.random.uniform(ks[5], (c, c), jnp.float32, -lim, lim),
        "out_proj_bias": jax.random.uniform(ks[6], (c,), jnp.float32, -lim, lim),
        "fc1": jax.random.uniform(ks[7], (c, c), jnp.float32, -lim, lim),
        "fc2": jax.random.uniform(ks[8], (c, c), jnp.float32, -lim, lim),
    }


if __name__ == "__main__":
    S, B, C, H = 8, 2, 32, 4   # seq=8, batch=2, hidden=32, 4 heads
    key = jax.random.PRNGKey(0)
    kx, kp = jax.random.split(key)
    x = jax.random.normal(kx, (S, B, C), jnp.float32)
    params = init_params(kp, C)

    ref = transformer_layer_reference(x, params, H)

    # f32 compute path: fold once, run kernel, tight check vs unfused reference.
    folded_f32 = fold_params(params, H)                     # one-time, outside per-call path
    out = jax.block_until_ready(transformer_layer(x, folded_f32))
    assert out.shape == (S, B, C)
    assert jnp.allclose(out, ref, atol=1e-3, rtol=1e-3), "f32 mismatch vs reference"

    # bf16 MXU-input path (f32 accumulation + f32 softmax): loose check.
    folded_bf16 = fold_params(params, H, compute_dtype=jnp.bfloat16)
    out_bf16 = jax.block_until_ready(transformer_layer(x, folded_bf16))
    assert jnp.all(jnp.isfinite(out_bf16))
    assert jnp.allclose(out_bf16, ref, atol=1e-1, rtol=1e-1), "bf16 mismatch vs reference"

    print("KERNEL_OK")
</pallas_src>

<mosaic_0001>
module attributes {stable_mosaic.version = 11 : i64} {
  func.func @_transformer_layer_kernel(%arg0: i32, %arg1: memref<16x32xf32, #tpu.memory_space<vmem>>, %arg2: memref<32x96xf32, #tpu.memory_space<vmem>>, %arg3: memref<1x96xf32, #tpu.memory_space<vmem>>, %arg4: memref<32x32xf32, #tpu.memory_space<vmem>>, %arg5: memref<1x32xf32, #tpu.memory_space<vmem>>, %arg6: memref<32x32xf32, #tpu.memory_space<vmem>>, %arg7: memref<16x32xf32, #tpu.memory_space<vmem>>) attributes {dimension_semantics = [#tpu.dimension_semantics<parallel>], iteration_bounds = array<i64: 1>, scalar_prefetch = 0 : i64, scratch_operands = 0 : i64, tpu.core_type = #tpu.core_type<tc>, window_params = [{transform_indices = @transform_0, window_bounds = array<i64: 16, 32>}, {pipeline_mode = #tpu.pipeline_mode<synchronous>, transform_indices = @transform_1, window_bounds = array<i64: 32, 96>}, {pipeline_mode = #tpu.pipeline_mode<synchronous>, transform_indices = @transform_2, window_bounds = array<i64: 1, 96>}, {pipeline_mode = #tpu.pipeline_mode<synchronous>, transform_indices = @transform_3, window_bounds = array<i64: 32, 32>}, {pipeline_mode = #tpu.pipeline_mode<synchronous>, transform_indices = @transform_4, window_bounds = array<i64: 1, 32>}, {pipeline_mode = #tpu.pipeline_mode<synchronous>, transform_indices = @transform_5, window_bounds = array<i64: 32, 32>}, {transform_indices = @transform_6, window_bounds = array<i64: 16, 32>}]} {
    %c0 = arith.constant 0 : index
    %c0_0 = arith.constant 0 : index
    %0 = vector.load %arg1[%c0, %c0_0] : memref<16x32xf32, #tpu.memory_space<vmem>>, vector<16x32xf32>
    %c0_1 = arith.constant 0 : index
    %c0_2 = arith.constant 0 : index
    %1 = vector.load %arg2[%c0_1, %c0_2] : memref<32x96xf32, #tpu.memory_space<vmem>>, vector<32x96xf32>
    %cst = arith.constant dense<0.000000e+00> : vector<16x96xf32>
    %2 = tpu.matmul %0, %1, %cst {dimension_numbers = #tpu.dot_dimension_numbers<[1], [0], [0], [1], [0, 0, 1, 1], [], []>} : vector<16x32xf32>, vector<32x96xf32>, vector<16x96xf32> -> vector<16x96xf32>
    %c0_3 = arith.constant 0 : index
    %c0_4 = arith.constant 0 : index
    %3 = vector.load %arg3[%c0_3, %c0_4] : memref<1x96xf32, #tpu.memory_space<vmem>>, vector<1x96xf32>
    %4 = vector.broadcast %3 : vector<1x96xf32> to vector<16x96xf32>
    %5 = arith.addf %2, %4 : vector<16x96xf32>
    %6 = vector.shape_cast %5 : vector<16x96xf32> to vector<2x8x96xf32>
    %7 = vector.extract_strided_slice %6 {offsets = [0, 0, 0], sizes = [2, 8, 8], strides = [1, 1, 1]} : vector<2x8x96xf32> to vector<2x8x8xf32>
    %8 = vector.extract_strided_slice %6 {offsets = [0, 0, 32], sizes = [2, 8, 8], strides = [1, 1, 1]} : vector<2x8x96xf32> to vector<2x8x8xf32>
    %9 = vector.extract_strided_slice %6 {offsets = [0, 0, 64], sizes = [2, 8, 8], strides = [1, 1, 1]} : vector<2x8x96xf32> to vector<2x8x8xf32>
    "tpu.trace_start"() <{level = 10 : i32, message = "bqd,bkd->bqk"}> : () -> ()
    %cst_5 = arith.constant dense<0.000000e+00> : vector<2x8x8xf32>
    %10 = tpu.matmul %7, %8, %cst_5 {dimension_numbers = #tpu.dot_dimension_numbers<[2], [2], [1], [1], [0, 0, 0, 1, 1, 1], [0], [0]>} : vector<2x8x8xf32>, vector<2x8x8xf32>, vector<2x8x8xf32> -> vector<2x8x8xf32>
    "tpu.trace_stop"() : () -> ()
    %cst_6 = arith.constant dense<0xFF800000> : vector<2x8xf32>
    %11 = vector.multi_reduction <maximumf>, %10, %cst_6 [2] : vector<2x8x8xf32> to vector<2x8xf32>
    %12 = vector.shape_cast %11 : vector<2x8xf32> to vector<2x8x1xf32>
    %13 = vector.broadcast %12 : vector<2x8x1xf32> to vector<2x8x8xf32>
    %14 = arith.subf %10, %13 : vector<2x8x8xf32>
    %15 = math.exp %14 : vector<2x8x8xf32>
    %cst_7 = arith.constant dense<0.000000e+00> : vector<2x8xf32>
    %16 = vector.multi_reduction <add>, %15, %cst_7 [2] : vector<2x8x8xf32> to vector<2x8xf32>
    %17 = vector.shape_cast %16 : vector<2x8xf32> to vector<2x8x1xf32>
    %18 = tpu.reciprocal %17 : vector<2x8x1xf32> -> vector<2x8x1xf32>
    %19 = vector.broadcast %18 : vector<2x8x1xf32> to vector<2x8x8xf32>
    %20 = arith.mulf %15, %19 : vector<2x8x8xf32>
    "tpu.trace_start"() <{level = 10 : i32, message = "bqk,bkd->bqd"}> : () -> ()
    %cst_8 = arith.constant dense<0.000000e+00> : vector<2x8x8xf32>
    %21 = tpu.matmul %20, %9, %cst_8 {dimension_numbers = #tpu.dot_dimension_numbers<[2], [1], [1], [2], [0, 0, 0, 1, 1, 2], [0], [0]>} : vector<2x8x8xf32>, vector<2x8x8xf32>, vector<2x8x8xf32> -> vector<2x8x8xf32>
    "tpu.trace_stop"() : () -> ()
    %22 = vector.extract_strided_slice %6 {offsets = [0, 0, 8], sizes = [2, 8, 8], strides = [1, 1, 1]} : vector<2x8x96xf32> to vector<2x8x8xf32>
    %23 = vector.extract_strided_slice %6 {offsets = [0, 0, 40], sizes = [2, 8, 8], strides = [1, 1, 1]} : vector<2x8x96xf32> to vector<2x8x8xf32>
    %24 = vector.extract_strided_slice %6 {offsets = [0, 0, 72], sizes = [2, 8, 8], strides = [1, 1, 1]} : vector<2x8x96xf32> to vector<2x8x8xf32>
    "tpu.trace_start"() <{level = 10 : i32, message = "bqd,bkd->bqk"}> : () -> ()
    %cst_9 = arith.constant dense<0.000000e+00> : vector<2x8x8xf32>
    %25 = tpu.matmul %22, %23, %cst_9 {dimension_numbers = #tpu.dot_dimension_numbers<[2], [2], [1], [1], [0, 0, 0, 1, 1, 1], [0], [0]>} : vector<2x8x8xf32>, vector<2x8x8xf32>, vector<2x8x8xf32> -> vector<2x8x8xf32>
    "tpu.trace_stop"() : () -> ()
    %cst_10 = arith.constant dense<0xFF800000> : vector<2x8xf32>
    %26 = vector.multi_reduction <maximumf>, %25, %cst_10 [2] : vector<2x8x8xf32> to vector<2x8xf32>
    %27 = vector.shape_cast %26 : vector<2x8xf32> to vector<2x8x1xf32>
    %28 = vector.broadcast %27 : vector<2x8x1xf32> to vector<2x8x8xf32>
    %29 = arith.subf %25, %28 : vector<2x8x8xf32>
    %30 = math.exp %29 : vector<2x8x8xf32>
    %cst_11 = arith.constant dense<0.000000e+00> : vector<2x8xf32>
    %31 = vector.multi_reduction <add>, %30, %cst_11 [2] : vector<2x8x8xf32> to vector<2x8xf32>
    %32 = vector.shape_cast %31 : vector<2x8xf32> to vector<2x8x1xf32>
    %33 = tpu.reciprocal %32 : vector<2x8x1xf32> -> vector<2x8x1xf32>
    %34 = vector.broadcast %33 : vector<2x8x1xf32> to vector<2x8x8xf32>
    %35 = arith.mulf %30, %34 : vector<2x8x8xf32>
    "tpu.trace_start"() <{level = 10 : i32, message = "bqk,bkd->bqd"}> : () -> ()
    %cst_12 = arith.constant dense<0.000000e+00> : vector<2x8x8xf32>
    %36 = tpu.matmul %35, %24, %cst_12 {dimension_numbers = #tpu.dot_dimension_numbers<[2], [1], [1], [2], [0, 0, 0, 1, 1, 2], [0], [0]>} : vector<2x8x8xf32>, vector<2x8x8xf32>, vector<2x8x8xf32> -> vector<2x8x8xf32>
    "tpu.trace_stop"() : () -> ()
    %37 = vector.extract_strided_slice %6 {offsets = [0, 0, 16], sizes = [2, 8, 8], strides = [1, 1, 1]} : vector<2x8x96xf32> to vector<2x8x8xf32>
    %38 = vector.extract_strided_slice %6 {offsets = [0, 0, 48], sizes = [2, 8, 8], strides = [1, 1, 1]} : vector<2x8x96xf32> to vector<2x8x8xf32>
    %39 = vector.extract_strided_slice %6 {offsets = [0, 0, 80], sizes = [2, 8, 8], strides = [1, 1, 1]} : vector<2x8x96xf32> to vector<2x8x8xf32>
    "tpu.trace_start"() <{level = 10 : i32, message = "bqd,bkd->bqk"}> : () -> ()
    %cst_13 = arith.constant dense<0.000000e+00> : vector<2x8x8xf32>
    %40 = tpu.matmul %37, %38, %cst_13 {dimension_numbers = #tpu.dot_dimension_numbers<[2], [2], [1], [1], [0, 0, 0, 1, 1, 1], [0], [0]>} : vector<2x8x8xf32>, vector<2x8x8xf32>, vector<2x8x8xf32> -> vector<2x8x8xf32>
    "tpu.trace_stop"() : () -> ()
    %cst_14 = arith.constant dense<0xFF800000> : vector<2x8xf32>
    %41 = vector.multi_reduction <maximumf>, %40, %cst_14 [2] : vector<2x8x8xf32> to vector<2x8xf32>
    %42 = vector.shape_cast %41 : vector<2x8xf32> to vector<2x8x1xf32>
    %43 = vector.broadcast %42 : vector<2x8x1xf32> to vector<2x8x8xf32>
    %44 = arith.subf %40, %43 : vector<2x8x8xf32>
    %45 = math.exp %44 : vector<2x8x8xf32>
    %cst_15 = arith.constant dense<0.000000e+00> : vector<2x8xf32>
    %46 = vector.multi_reduction <add>, %45, %cst_15 [2] : vector<2x8x8xf32> to vector<2x8xf32>
    %47 = vector.shape_cast %46 : vector<2x8xf32> to vector<2x8x1xf32>
    %48 = tpu.reciprocal %47 : vector<2x8x1xf32> -> vector<2x8x1xf32>
    %49 = vector.broadcast %48 : vector<2x8x1xf32> to vector<2x8x8xf32>
    %50 = arith.mulf %45, %49 : vector<2x8x8xf32>
    "tpu.trace_start"() <{level = 10 : i32, message = "bqk,bkd->bqd"}> : () -> ()
    %cst_16 = arith.constant dense<0.000000e+00> : vector<2x8x8xf32>
    %51 = tpu.matmul %50, %39, %cst_16 {dimension_numbers = #tpu.dot_dimension_numbers<[2], [1], [1], [2], [0, 0, 0, 1, 1, 2], [0], [0]>} : vector<2x8x8xf32>, vector<2x8x8xf32>, vector<2x8x8xf32> -> vector<2x8x8xf32>
    "tpu.trace_stop"() : () -> ()
    %52 = vector.extract_strided_slice %6 {offsets = [0, 0, 24], sizes = [2, 8, 8], strides = [1, 1, 1]} : vector<2x8x96xf32> to vector<2x8x8xf32>
    %53 = vector.extract_strided_slice %6 {offsets = [0, 0, 56], sizes = [2, 8, 8], strides = [1, 1, 1]} : vector<2x8x96xf32> to vector<2x8x8xf32>
    %54 = vector.extract_strided_slice %6 {offsets = [0, 0, 88], sizes = [2, 8, 8], strides = [1, 1, 1]} : vector<2x8x96xf32> to vector<2x8x8xf32>
    "tpu.trace_start"() <{level = 10 : i32, message = "bqd,bkd->bqk"}> : () -> ()
    %cst_17 = arith.constant dense<0.000000e+00> : vector<2x8x8xf32>
    %55 = tpu.matmul %52, %53, %cst_17 {dimension_numbers = #tpu.dot_dimension_numbers<[2], [2], [1], [1], [0, 0, 0, 1, 1, 1], [0], [0]>} : vector<2x8x8xf32>, vector<2x8x8xf32>, vector<2x8x8xf32> -> vector<2x8x8xf32>
    "tpu.trace_stop"() : () -> ()
    %cst_18 = arith.constant dense<0xFF800000> : vector<2x8xf32>
    %56 = vector.multi_reduction <maximumf>, %55, %cst_18 [2] : vector<2x8x8xf32> to vector<2x8xf32>
    %57 = vector.shape_cast %56 : vector<2x8xf32> to vector<2x8x1xf32>
    %58 = vector.broadcast %57 : vector<2x8x1xf32> to vector<2x8x8xf32>
    %59 = arith.subf %55, %58 : vector<2x8x8xf32>
    %60 = math.exp %59 : vector<2x8x8xf32>
    %cst_19 = arith.constant dense<0.000000e+00> : vector<2x8xf32>
    %61 = vector.multi_reduction <add>, %60, %cst_19 [2] : vector<2x8x8xf32> to vector<2x8xf32>
    %62 = vector.shape_cast %61 : vector<2x8xf32> to vector<2x8x1xf32>
    %63 = tpu.reciprocal %62 : vector<2x8x1xf32> -> vector<2x8x1xf32>
    %64 = vector.broadcast %63 : vector<2x8x1xf32> to vector<2x8x8xf32>
    %65 = arith.mulf %60, %64 : vector<2x8x8xf32>
    "tpu.trace_start"() <{level = 10 : i32, message = "bqk,bkd->bqd"}> : () -> ()
    %cst_20 = arith.constant dense<0.000000e+00> : vector<2x8x8xf32>
    %66 = tpu.matmul %65, %54, %cst_20 {dimension_numbers = #tpu.dot_dimension_numbers<[2], [1], [1], [2], [0, 0, 0, 1, 1, 2], [0], [0]>} : vector<2x8x8xf32>, vector<2x8x8xf32>, vector<2x8x8xf32> -> vector<2x8x8xf32>
    "tpu.trace_stop"() : () -> ()
    %67 = tpu.concatenate %21, %36, %51, %66 in 2 : vector<2x8x8xf32>, vector<2x8x8xf32>, vector<2x8x8xf32>, vector<2x8x8xf32> -> vector<2x8x32xf32>
    %68 = vector.shape_cast %67 : vector<2x8x32xf32> to vector<16x32xf32>
    %c0_21 = arith.constant 0 : index
    %c0_22 = arith.constant 0 : index
    %69 = vector.load %arg4[%c0_21, %c0_22] : memref<32x32xf32, #tpu.memory_space<vmem>>, vector<32x32xf32>
    %cst_23 = arith.constant dense<0.000000e+00> : vector<16x32xf32>
    %70 = tpu.matmul %68, %69, %cst_23 {dimension_numbers = #tpu.dot_dimension_numbers<[1], [0], [0], [1], [0, 0, 1, 1], [], []>} : vector<16x32xf32>, vector<32x32xf32>, vector<16x32xf32> -> vector<16x32xf32>
    %c0_24 = arith.constant 0 : index
    %c0_25 = arith.constant 0 : index
    %71 = vector.load %arg5[%c0_24, %c0_25] : memref<1x32xf32, #tpu.memory_space<vmem>>, vector<1x32xf32>
    %72 = vector.broadcast %71 : vector<1x32xf32> to vector<16x32xf32>
    %73 = arith.addf %70, %72 : vector<16x32xf32>
    %74 = arith.addf %73, %0 : vector<16x32xf32>
    %c0_26 = arith.constant 0 : index
    %c0_27 = arith.constant 0 : index
    %75 = vector.load %arg6[%c0_26, %c0_27] : memref<32x32xf32, #tpu.memory_space<vmem>>, vector<32x32xf32>
    %cst_28 = arith.constant dense<0.000000e+00> : vector<16x32xf32>
    %76 = tpu.matmul %74, %75, %cst_28 {dimension_numbers = #tpu.dot_dimension_numbers<[1], [0], [0], [1], [0, 0, 1, 1], [], []>} : vector<16x32xf32>, vector<32x32xf32>, vector<16x32xf32> -> vector<16x32xf32>
    %77 = arith.addf %76, %74 : vector<16x32xf32>
    %c0_29 = arith.constant 0 : index
    %c0_30 = arith.constant 0 : index
    %78 = vector.load %arg7[%c0_29, %c0_30] : memref<16x32xf32, #tpu.memory_space<vmem>>, vector<16x32xf32>
    tpu.vector_store %arg7[%c0_29, %c0_30], %77 {strides = array<i32>} : memref<16x32xf32, #tpu.memory_space<vmem>>, vector<16x32xf32>,
    return
  }
  func.func @transform_0(%arg0: i32) -> (i32, i32) {
    %c0_i32 = arith.constant 0 : i32
    %c0_i32_0 = arith.constant 0 : i32
    return %arg0, %c0_i32 : i32, i32
  }
  func.func @transform_1(%arg0: i32) -> (i32, i32) {
    %c0_i32 = arith.constant 0 : i32
    %c0_i32_0 = arith.constant 0 : i32
    %c0_i32_1 = arith.constant 0 : i32
    return %c0_i32, %c0_i32_0 : i32, i32
  }
  func.func @transform_2(%arg0: i32) -> (i32, i32) {
    %c0_i32 = arith.constant 0 : i32
    %c0_i32_0 = arith.constant 0 : i32
    %c0_i32_1 = arith.constant 0 : i32
    return %c0_i32, %c0_i32_0 : i32, i32
  }
  func.func @transform_3(%arg0: i32) -> (i32, i32) {
    %c0_i32 = arith.constant 0 : i32
    %c0_i32_0 = arith.constant 0 : i32
    %c0_i32_1 = arith.constant 0 : i32
    return %c0_i32, %c0_i32_0 : i32, i32
  }
  func.func @transform_4(%arg0: i32) -> (i32, i32) {
    %c0_i32 = arith.constant 0 : i32
    %c0_i32_0 = arith.constant 0 : i32
    %c0_i32_1 = arith.constant 0 : i32
    return %c0_i32, %c0_i32_0 : i32, i32
  }
  func.func @transform_5(%arg0: i32) -> (i32, i32) {
    %c0_i32 = arith.constant 0 : i32
    %c0_i32_0 = arith.constant 0 : i32
    %c0_i32_1 = arith.constant 0 : i32
    return %c0_i32, %c0_i32_0 : i32, i32
  }
  func.func @transform_6(%arg0: i32) -> (i32, i32) {
    %c0_i32 = arith.constant 0 : i32
    %c0_i32_0 = arith.constant 0 : i32
    return %arg0, %c0_i32 : i32, i32
  }
}

</mosaic_0001>

<llo_original>
// kernel: tpu_custom_call.1
$region0: #{tpu_custom_call.1}
  #allocation0 [shape = 'u32[]', space=smem, size = 0x4, offset = 0x4, fixed_abs, tag = 'smem constant byte address 0x4 - core index']
  #allocation1 [shape = 'u32[144,128]{1,0:T(1,128)}', space=vmem, size = 0x12000, scoped, tag = 'internal scratch']
  %s0 = inlined_call_operand.hbm [shape: f32[16,32], index: 0, kind: input, shape index: {}]
  %s1 = inlined_call_operand.hbm [shape: f32[32,96], index: 1, kind: input, shape index: {}]
  %s2 = inlined_call_operand.vmem [shape: f32[1,96], index: 2, kind: input, shape index: {}]
  %s3 = inlined_call_operand.hbm [shape: f32[32,32], index: 3, kind: input, shape index: {}]
  %s4 = inlined_call_operand.vmem [shape: f32[1,32], index: 4, kind: input, shape index: {}]
  %s5 = inlined_call_operand.hbm [shape: f32[32,32], index: 5, kind: input, shape index: {}]
  %s6 = inlined_call_operand.hbm [shape: f32[16,32], index: 6, kind: output, shape index: {}]
  %s7 = sld [smem:[#allocation0]]
  $region50: #{tpu_custom_call.1} parent=0
    _
  %s9 = ssub.s32 1, %s7
  %s10 = scalar_select 0, %s9, %s7
  $region1: #{tpu_custom_call.1} parent=0
    #allocation2 [shape = 'u8[8192]{0}', space=vmem, size = 0x2000, scoped, tag = 'input window, operand 0, single buffered']
    #allocation3 [shape = 's32[1]{0}', space=sflag, size = 0x4, scoped, tag = 'scoped memory for tpu_custom_call.1']
    #allocation4 [shape = 's32[1]{0}', space=sflag, size = 0x4, scoped, tag = 'scoped memory for tpu_custom_call.1']
    #allocation5 [shape = 'u8[16384]{0}', space=vmem, size = 0x4000, scoped, tag = 'input window, operand 1, single buffered']
    #allocation6 [shape = 's32[1]{0}', space=sflag, size = 0x4, scoped, tag = 'scoped memory for tpu_custom_call.1']
    #allocation7 [shape = 'u8[16384]{0}', space=vmem, size = 0x4000, scoped, tag = 'input window, operand 3, single buffered']
    #allocation8 [shape = 'u8[16384]{0}', space=vmem, size = 0x4000, scoped, tag = 'input window, operand 5, single buffered']
    #allocation9 [shape = 's32[1]{0}', space=sflag, size = 0x4, scoped, tag = 'scoped memory for tpu_custom_call.1']
    #allocation10 [shape = 'u8[8192]{0}', space=vmem, size = 0x2000, scoped, tag = 'output window, operand 0, single buffered']
    %11 = vsyncpa [#allocation3], 0
    %12 = vsyncpa [#allocation6], 0
    %13 = vsyncpa [#allocation9], 0
    %14 = vsyncpa [#allocation4], 0
    // Predicated region
    $region2: #{tpu_custom_call.1} parent=1 // pred_check
      _
    $region3: #{tpu_custom_call.1} parent=1 // pred_check_branch
      %16 = sbr.rel (0) target = $region5
    $region4: #{tpu_custom_call.1} parent=1 // pred_region
      %s18 = ssub.s32 256, 256
      %19 = vsyncadd [#allocation3], %s18
      %s20 = sshll.u32 [#allocation2], 4
      %s21 = int_to_ptr.vmem [resolvable:$true] %s20
      %26 = dma.hbm_to_vmem [thread:$0]  %s0, 256, %s21, [#allocation3], 128, 128, 8
    $region5: #{tpu_custom_call.1} parent=1 // pred_fallthru
      _
    // Predicated region
    $region6: #{tpu_custom_call.1} parent=1 // pred_check
      _
    $region7: #{tpu_custom_call.1} parent=1 // pred_check_branch
      %28 = sbr.rel (0) target = $region9
    $region8: #{tpu_custom_call.1} parent=1 // pred_region
      %s30 = ssub.s32 512, 512
      %31 = vsyncadd [#allocation6], %s30
      %s32 = sshll.u32 [#allocation5], 4
      %s33 = int_to_ptr.vmem [resolvable:$true] %s32
      %38 = dma.hbm_to_vmem [thread:$0]  %s1, 512, %s33, [#allocation6], 128, 128, 8
    $region9: #{tpu_custom_call.1} parent=1 // pred_fallthru
      _
    // Predicated region
    $region10: #{tpu_custom_call.1} parent=1 // pred_check
      _
    $region11: #{tpu_custom_call.1} parent=1 // pred_check_branch
      %40 = sbr.rel (0) target = $region13
    $region12: #{tpu_custom_call.1} parent=1 // pred_region
      _
    $region13: #{tpu_custom_call.1} parent=1 // pred_fallthru
      _
    // Predicated region
    $region14: #{tpu_custom_call.1} parent=1 // pred_check
      _
    $region15: #{tpu_custom_call.1} parent=1 // pred_check_branch
      %42 = sbr.rel (0) target = $region17
    $region16: #{tpu_custom_call.1} parent=1 // pred_region
      %s44 = ssub.s32 512, 512
      %45 = vsyncadd [#allocation6], %s44
      %s46 = sshll.u32 [#allocation7], 4
      %s47 = int_to_ptr.vmem [resolvable:$true] %s46
      %52 = dma.hbm_to_vmem [thread:$0]  %s3, 512, %s47, [#allocation6], 128, 128, 8
    $region17: #{tpu_custom_call.1} parent=1 // pred_fallthru
      _
    // Predicated region
    $region18: #{tpu_custom_call.1} parent=1 // pred_check
      _
    $region19: #{tpu_custom_call.1} parent=1 // pred_check_branch
      %54 = sbr.rel (0) target = $region21
    $region20: #{tpu_custom_call.1} parent=1 // pred_region
      _
    $region21: #{tpu_custom_call.1} parent=1 // pred_fallthru
      _
    // Predicated region
    $region22: #{tpu_custom_call.1} parent=1 // pred_check
      _
    $region23: #{tpu_custom_call.1} parent=1 // pred_check_branch
      %56 = sbr.rel (0) target = $region25
    $region24: #{tpu_custom_call.1} parent=1 // pred_region
      %s58 = ssub.s32 512, 512
      %59 = vsyncadd [#allocation9], %s58
      %s60 = sshll.u32 [#allocation8], 4
      %s61 = int_to_ptr.vmem [resolvable:$true] %s60
      %66 = dma.hbm_to_vmem [thread:$0]  %s5, 512, %s61, [#allocation9], 128, 128, 8
    $region25: #{tpu_custom_call.1} parent=1 // pred_fallthru
      _
    // Predicated region
    $region26: #{tpu_custom_call.1} parent=1 // pred_check
      _
    $region27: #{tpu_custom_call.1} parent=1 // pred_check_branch
      %68 = sbr.rel (0) target = $region29
    $region28: #{tpu_custom_call.1} parent=1 // pred_region
      %69 = dma.done [#allocation3], 256
    $region29: #{tpu_custom_call.1} parent=1 // pred_fallthru
      _
    // Predicated region
    $region30: #{tpu_custom_call.1} parent=1 // pred_check
      _
    $region31: #{tpu_custom_call.1} parent=1 // pred_check_branch
      %71 = sbr.rel (0) target = $region33
    $region32: #{tpu_custom_call.1} parent=1 // pred_region
      %72 = dma.done [#allocation6], 512
    $region33: #{tpu_custom_call.1} parent=1 // pred_fallthru
      _
    // Predicated region
    $region34: #{tpu_custom_call.1} parent=1 // pred_check
      _
    $region35: #{tpu_custom_call.1} parent=1 // pred_check_branch
      %74 = sbr.rel (0) target = $region37
    $region36: #{tpu_custom_call.1} parent=1 // pred_region
      %75 = dma.done [#allocation6], 512
    $region37: #{tpu_custom_call.1} parent=1 // pred_fallthru
      _
    // Predicated region
    $region38: #{tpu_custom_call.1} parent=1 // pred_check
      _
    $region39: #{tpu_custom_call.1} parent=1 // pred_check_branch
      %77 = sbr.rel (0) target = $region41
    $region40: #{tpu_custom_call.1} parent=1 // pred_region
      %78 = dma.done [#allocation9], 512
    $region41: #{tpu_custom_call.1} parent=1 // pred_fallthru
      _
    %v79 = vld [vmem:[#allocation2] sm:$0xff]
    %v80 = vld [vmem:[#allocation2 + $0x8] sm:$0xff]
    %v81 = vld [vmem:[#allocation5] sm:$0xff]
    %v82 = vld [vmem:[#allocation5 + $0x8] sm:$0xff]
    %v83 = vld [vmem:[#allocation5 + $0x10] sm:$0xff]
    %v84 = vld [vmem:[#allocation5 + $0x18] sm:$0xff]
    %v85 = vld [vmem:[%s2] sm:$0x1]
    %v87 = vlaneseq
    %v88 = vshrl.u32 %v87, 7
    %v89 = vsub.s32 0, %v88
    %v90 = vrot.slane %v85, %v89
    %vm92 = vcmask 261120
    %v94 = vsel %vm92, %v79, 0
    %v97 = vsel %vm92, %v80, 0
    %99 = vmatprep.subr.mxu0 0.0
    %100 = vmatpush1.msra.mxu0 0.0
    %101 = vmatprep.subr.mxu0 0.0
    %102 = vmatpush1.msra.mxu0 0.0
    %103 = vmatprep.subr.mxu0 0.0
    %104 = vmatpush1.msra.mxu0 0.0
    %105 = vmatprep.subr.mxu0 0.0
    %106 = vmatpush1.msra.mxu0 0.0
    %107 = vmatprep.subr.mxu0 0.0
    %108 = vmatpush1.msra.mxu0 0.0
    %109 = vmatprep.subr.mxu0 0.0
    %110 = vmatpush1.msra.mxu0 0.0
    %111 = vmatprep.subr.mxu0 0.0
    %112 = vmatpush1.msra.mxu0 0.0
    %113 = vmatprep.subr.mxu0 0.0
    %114 = vmatpush1.msra.mxu0 0.0
    %115 = vmatprep.subr.mxu0 0.0
    %116 = vmatpush1.msra.mxu0 0.0
    %117 = vmatprep.subr.mxu0 0.0
    %118 = vmatpush1.msra.mxu0 0.0
    %119 = vmatprep.subr.mxu0 0.0
    %120 = vmatpush1.msra.mxu0 0.0
    %121 = vmatprep.subr.mxu0 0.0
    %122 = vmatpush1.msra.mxu0 0.0
    %123 = vmatprep.subr.mxu0 0.0
    %124 = vmatpush1.msra.mxu0 %v84
    %125 = vmatprep.subr.mxu0 0.0
    %126 = vmatpush1.msra.mxu0 %v83
    %127 = vmatprep.subr.mxu0 0.0
    %128 = vmatpush1.msra.mxu0 %v82
    %129 = vmatprep.subr.mxu0 0.0
    %130 = vmatpush1.msra.mxu0 %v81
    %131 = vmatprep.subr.mxu0 0.0
    %132 = vmatpush2.msra.mxu0 0.0
    %133 = vmatprep.subr.mxu0 0.0
    %134 = vmatpush2.msra.mxu0 0.0
    %135 = vmatprep.subr.mxu0 0.0
    %136 = vmatpush2.msra.mxu0 0.0
    %137 = vmatprep.subr.mxu0 0.0
    %138 = vmatpush2.msra.mxu0 0.0
    %139 = vmatprep.subr.mxu0 0.0
    %140 = vmatpush2.msra.mxu0 0.0
    %141 = vmatprep.subr.mxu0 0.0
    %142 = vmatpush2.msra.mxu0 0.0
    %143 = vmatprep.subr.mxu0 0.0
    %144 = vmatpush2.msra.mxu0 0.0
    %145 = vmatprep.subr.mxu0 0.0
    %146 = vmatpush2.msra.mxu0 0.0
    %147 = vmatprep.subr.mxu0 0.0
    %148 = vmatpush2.msra.mxu0 0.0
    %149 = vmatprep.subr.mxu0 0.0
    %150 = vmatpush2.msra.mxu0 0.0
    %151 = vmatprep.subr.mxu0 0.0
    %152 = vmatpush2.msra.mxu0 0.0
    %153 = vmatprep.subr.mxu0 0.0
    %154 = vmatpush2.msra.mxu0 0.0
    %155 = vmatprep.subr.mxu0 0.0
    %156 = vmatpush2.msra.mxu0 0.0
    %157 = vmatprep.subr.mxu0 0.0
    %158 = vmatpush2.msra.mxu0 0.0
    %159 = vmatprep.subr.mxu0 0.0
    %160 = vmatpush2.msra.mxu0 0.0
    %161 = vmatprep.subr.mxu0 0.0
    %162 = vmatpush2.msra.mxu0 0.0
    %163 = vmatprep.mubr.f32.mxu0 0.0
    %164 = vmatmul.mubr.f32.gmra.mxu0 %v94
    %v165 = vpop.f32.mrf.mxu0
    %v166 = vadd.f32 %v90, %v165
    %v167 = vpop.f32.mrf.mxu0
    %168 = vmatprep.mubr.f32.mxu0 0.0
    %169 = vmatmul.mubr.f32.gmra.mxu0 %v97
    %v170 = vpop.f32.mrf.mxu0
    %v171 = vadd.f32 %v90, %v170
    %v172 = vpop.f32.mrf.mxu0
    %173 = vdwg.mxu0
    %175 = vrot.lane.b32.xlu0 %v166, 96
    %v176 = vpop.permute.xlu0 %175
    %vm177 = vcmask 64512
    %v178 = vsel %vm177, %v166, 0
    %v180 = vsel %vm177, %v176, 0
    %182 = vmatprep.subr.mxu0 0.0
    %183 = vmatpush1.xpose.msra.mxu0 0.0
    %184 = vmatprep.subr.mxu0 0.0
    %185 = vmatpush1.xpose.msra.mxu0 0.0
    %186 = vmatprep.subr.mxu0 0.0
    %187 = vmatpush1.xpose.msra.mxu0 0.0
    %188 = vmatprep.subr.mxu0 0.0
    %189 = vmatpush1.xpose.msra.mxu0 0.0
    %190 = vmatprep.subr.mxu0 0.0
    %191 = vmatpush1.xpose.msra.mxu0 0.0
    %192 = vmatprep.subr.mxu0 0.0
    %193 = vmatpush1.xpose.msra.mxu0 0.0
    %194 = vmatprep.subr.mxu0 0.0
    %195 = vmatpush1.xpose.msra.mxu0 0.0
    %196 = vmatprep.subr.mxu0 0.0
    %197 = vmatpush1.xpose.msra.mxu0 0.0
    %198 = vmatprep.subr.mxu0 0.0
    %199 = vmatpush1.xpose.msra.mxu0 0.0
    %200 = vmatprep.subr.mxu0 0.0
    %201 = vmatpush1.xpose.msra.mxu0 0.0
    %202 = vmatprep.subr.mxu0 0.0
    %203 = vmatpush1.xpose.msra.mxu0 0.0
    %204 = vmatprep.subr.mxu0 0.0
    %205 = vmatpush1.xpose.msra.mxu0 0.0
    %206 = vmatprep.subr.mxu0 0.0
    %207 = vmatpush1.xpose.msra.mxu0 0.0
    %208 = vmatprep.subr.mxu0 0.0
    %209 = vmatpush1.xpose.msra.mxu0 0.0
    %210 = vmatprep.subr.mxu0 0.0
    %211 = vmatpush1.xpose.msra.mxu0 0.0
    %212 = vmatprep.subr.mxu0 0.0
    %213 = vmatpush1.xpose.msra.mxu0 %v180
    %214 = vmatprep.subr.mxu0 0.0
    %215 = vmatpush2.xpose.msra.mxu0 0.0
    %216 = vmatprep.subr.mxu0 0.0
    %217 = vmatpush2.xpose.msra.mxu0 0.0
    %218 = vmatprep.subr.mxu0 0.0
    %219 = vmatpush2.xpose.msra.mxu0 0.0
    %220 = vmatprep.subr.mxu0 0.0
    %221 = vmatpush2.xpose.msra.mxu0 0.0
    %222 = vmatprep.subr.mxu0 0.0
    %223 = vmatpush2.xpose.msra.mxu0 0.0
    %224 = vmatprep.subr.mxu0 0.0
    %225 = vmatpush2.xpose.msra.mxu0 0.0
    %226 = vmatprep.subr.mxu0 0.0
    %227 = vmatpush2.xpose.msra.mxu0 0.0
    %228 = vmatprep.subr.mxu0 0.0
    %229 = vmatpush2.xpose.msra.mxu0 0.0
    %230 = vmatprep.subr.mxu0 0.0
    %231 = vmatpush2.xpose.msra.mxu0 0.0
    %232 = vmatprep.subr.mxu0 0.0
    %233 = vmatpush2.xpose.msra.mxu0 0.0
    %234 = vmatprep.subr.mxu0 0.0
    %235 = vmatpush2.xpose.msra.mxu0 0.0
    %236 = vmatprep.subr.mxu0 0.0
    %237 = vmatpush2.xpose.msra.mxu0 0.0
    %238 = vmatprep.subr.mxu0 0.0
    %239 = vmatpush2.xpose.msra.mxu0 0.0
    %240 = vmatprep.subr.mxu0 0.0
    %241 = vmatpush2.xpose.msra.mxu0 0.0
    %242 = vmatprep.subr.mxu0 0.0
    %243 = vmatpush2.xpose.msra.mxu0 0.0
    %244 = vmatprep.subr.mxu0 0.0
    %245 = vmatpush2.xpose.msra.mxu0 0.0
    %246 = vmatprep.mubr.f32.mxu0 0.0
    %247 = vmatmul.mubr.f32.gmra.mxu0 %v178
    %v248 = vpop.f32.mrf.mxu0
    %v249 = vadd.f32 0.0, %v248
    %v250 = vpop.f32.mrf.mxu0
    %251 = vdwg.mxu0
    %253 = vrot.lane.b32.xlu0 %v171, 96
    %v254 = vpop.permute.xlu0 %253
    %v255 = vsel %vm177, %v171, 0
    %v257 = vsel %vm177, %v254, 0
    %259 = vmatprep.subr.mxu0 0.0
    %260 = vmatpush1.xpose.msra.mxu0 0.0
    %261 = vmatprep.subr.mxu0 0.0
    %262 = vmatpush1.xpose.msra.mxu0 0.0
    %263 = vmatprep.subr.mxu0 0.0
    %264 = vmatpush1.xpose.msra.mxu0 0.0
    %265 = vmatprep.subr.mxu0 0.0
    %266 = vmatpush1.xpose.msra.mxu0 0.0
    %267 = vmatprep.subr.mxu0 0.0
    %268 = vmatpush1.xpose.msra.mxu0 0.0
    %269 = vmatprep.subr.mxu0 0.0
    %270 = vmatpush1.xpose.msra.mxu0 0.0
    %271 = vmatprep.subr.mxu0 0.0
    %272 = vmatpush1.xpose.msra.mxu0 0.0
    %273 = vmatprep.subr.mxu0 0.0
    %274 = vmatpush1.xpose.msra.mxu0 0.0
    %275 = vmatprep.subr.mxu0 0.0
    %276 = vmatpush1.xpose.msra.mxu0 0.0
    %277 = vmatprep.subr.mxu0 0.0
    %278 = vmatpush1.xpose.msra.mxu0 0.0
    %279 = vmatprep.subr.mxu0 0.0
    %280 = vmatpush1.xpose.msra.mxu0 0.0
    %281 = vmatprep.subr.mxu0 0.0
    %282 = vmatpush1.xpose.msra.mxu0 0.0
    %283 = vmatprep.subr.mxu0 0.0
    %284 = vmatpush1.xpose.msra.mxu0 0.0
    %285 = vmatprep.subr.mxu0 0.0
    %286 = vmatpush1.xpose.msra.mxu0 0.0
    %287 = vmatprep.subr.mxu0 0.0
    %288 = vmatpush1.xpose.msra.mxu0 0.0
    %289 = vmatprep.subr.mxu0 0.0
    %290 = vmatpush1.xpose.msra.mxu0 %v257
    %291 = vmatprep.subr.mxu0 0.0
    %292 = vmatpush2.xpose.msra.mxu0 0.0
    %293 = vmatprep.subr.mxu0 0.0
    %294 = vmatpush2.xpose.msra.mxu0 0.0
    %295 = vmatprep.subr.mxu0 0.0
    %296 = vmatpush2.xpose.msra.mxu0 0.0
    %297 = vmatprep.subr.mxu0 0.0
    %298 = vmatpush2.xpose.msra.mxu0 0.0
    %299 = vmatprep.subr.mxu0 0.0
    %300 = vmatpush2.xpose.msra.mxu0 0.0
    %301 = vmatprep.subr.mxu0 0.0
    %302 = vmatpush2.xpose.msra.mxu0 0.0
    %303 = vmatprep.subr.mxu0 0.0
    %304 = vmatpush2.xpose.msra.mxu0 0.0
    %305 = vmatprep.subr.mxu0 0.0
    %306 = vmatpush2.xpose.msra.mxu0 0.0
    %307 = vmatprep.subr.mxu0 0.0
    %308 = vmatpush2.xpose.msra.mxu0 0.0
    %309 = vmatprep.subr.mxu0 0.0
    %310 = vmatpush2.xpose.msra.mxu0 0.0
    %311 = vmatprep.subr.mxu0 0.0
    %312 = vmatpush2.xpose.msra.mxu0 0.0
    %313 = vmatprep.subr.mxu0 0.0
    %314 = vmatpush2.xpose.msra.mxu0 0.0
    %315 = vmatprep.subr.mxu0 0.0
    %316 = vmatpush2.xpose.msra.mxu0 0.0
    %317 = vmatprep.subr.mxu0 0.0
    %318 = vmatpush2.xpose.msra.mxu0 0.0
    %319 = vmatprep.subr.mxu0 0.0
    %320 = vmatpush2.xpose.msra.mxu0 0.0
    %321 = vmatprep.subr.mxu0 0.0
    %322 = vmatpush2.xpose.msra.mxu0 0.0
    %323 = vmatprep.mubr.f32.mxu0 0.0
    %324 = vmatmul.mubr.f32.gmra.mxu0 %v255
    %v325 = vpop.f32.mrf.mxu0
    %v326 = vadd.f32 0.0, %v325
    %v327 = vpop.f32.mrf.mxu0
    %328 = vdwg.mxu0
    %v329 = vsel %vm177, %v249, -inf
    %330 = vmax.xlane.f32.xlu0 %v329
    %v331 = vpop.xlane.xlu0 %330
    %v332 = vsel %vm177, %v326, -inf
    %333 = vmax.xlane.f32.xlu0 %v332
    %v334 = vpop.xlane.xlu0 %333
    %v335 = vsub.f32 %v249, %v331
    %v336 = vsub.f32 %v326, %v334
    %v337 = vmul.f32 %v335, 1.442695
    %v338 = vpow.pop %v337
    %v339 = vmul.f32 %v336, 1.442695
    %v340 = vpow.pop %v339
    %v341 = vsel %vm177, %v338, 0.0
    %342 = vadd.xlane.f32.xlu0 %v341
    %v343 = vpop.xlane.xlu0 %342
    %v344 = vsel %vm177, %v340, 0.0
    %345 = vadd.xlane.f32.xlu0 %v344
    %v346 = vpop.xlane.xlu0 %345
    %v347 = vrcp.pop %v343
    %v348 = vrcp.pop %v346
    %v349 = vmul.f32 %v338, %v347
    %v350 = vmul.f32 %v340, %v348
    %351 = vrot.lane.b32.xlu0 %v166, 64
    %v352 = vpop.permute.xlu0 %351
    %v355 = vsel %vm177, %v349, 0
    %357 = vmatprep.subr.mxu0 0.0
    %358 = vmatpush1.msra.mxu0 0.0
    %359 = vmatprep.subr.mxu0 0.0
    %360 = vmatpush1.msra.mxu0 0.0
    %361 = vmatprep.subr.mxu0 0.0
    %362 = vmatpush1.msra.mxu0 0.0
    %363 = vmatprep.subr.mxu0 0.0
    %364 = vmatpush1.msra.mxu0 0.0
    %365 = vmatprep.subr.mxu0 0.0
    %366 = vmatpush1.msra.mxu0 0.0
    %367 = vmatprep.subr.mxu0 0.0
    %368 = vmatpush1.msra.mxu0 0.0
    %369 = vmatprep.subr.mxu0 0.0
    %370 = vmatpush1.msra.mxu0 0.0
    %371 = vmatprep.subr.mxu0 0.0
    %372 = vmatpush1.msra.mxu0 0.0
    %373 = vmatprep.subr.mxu0 0.0
    %374 = vmatpush1.msra.mxu0 0.0
    %375 = vmatprep.subr.mxu0 0.0
    %376 = vmatpush1.msra.mxu0 0.0
    %377 = vmatprep.subr.mxu0 0.0
    %378 = vmatpush1.msra.mxu0 0.0
    %379 = vmatprep.subr.mxu0 0.0
    %380 = vmatpush1.msra.mxu0 0.0
    %381 = vmatprep.subr.mxu0 0.0
    %382 = vmatpush1.msra.mxu0 0.0
    %383 = vmatprep.subr.mxu0 0.0
    %384 = vmatpush1.msra.mxu0 0.0
    %385 = vmatprep.subr.mxu0 0.0
    %386 = vmatpush1.msra.mxu0 0.0
    %387 = vmatprep.subr.mxu0 0.0
    %388 = vmatpush1.msra.mxu0 %v352
    %389 = vmatprep.subr.mxu0 0.0
    %390 = vmatpush2.msra.mxu0 0.0
    %391 = vmatprep.subr.mxu0 0.0
    %392 = vmatpush2.msra.mxu0 0.0
    %393 = vmatprep.subr.mxu0 0.0
    %394 = vmatpush2.msra.mxu0 0.0
    %395 = vmatprep.subr.mxu0 0.0
    %396 = vmatpush2.msra.mxu0 0.0
    %397 = vmatprep.subr.mxu0 0.0
    %398 = vmatpush2.msra.mxu0 0.0
    %399 = vmatprep.subr.mxu0 0.0
    %400 = vmatpush2.msra.mxu0 0.0
    %401 = vmatprep.subr.mxu0 0.0
    %402 = vmatpush2.msra.mxu0 0.0
    %403 = vmatprep.subr.mxu0 0.0
    %404 = vmatpush2.msra.mxu0 0.0
    %405 = vmatprep.subr.mxu0 0.0
    %406 = vmatpush2.msra.mxu0 0.0
    %407 = vmatprep.subr.mxu0 0.0
    %408 = vmatpush2.msra.mxu0 0.0
    %409 = vmatprep.subr.mxu0 0.0
    %410 = vmatpush2.msra.mxu0 0.0
    %411 = vmatprep.subr.mxu0 0.0
    %412 = vmatpush2.msra.mxu0 0.0
    %413 = vmatprep.subr.mxu0 0.0
    %414 = vmatpush2.msra.mxu0 0.0
    %415 = vmatprep.subr.mxu0 0.0
    %416 = vmatpush2.msra.mxu0 0.0
    %417 = vmatprep.subr.mxu0 0.0
    %418 = vmatpush2.msra.mxu0 0.0
    %419 = vmatprep.subr.mxu0 0.0
    %420 = vmatpush2.msra.mxu0 0.0
    %421 = vmatprep.mubr.f32.mxu0 0.0
    %422 = vmatmul.mubr.f32.gmra.mxu0 %v355
    %v423 = vpop.f32.mrf.mxu0
    %v424 = vadd.f32 0.0, %v423
    %v425 = vpop.f32.mrf.mxu0
    %426 = vdwg.mxu0
    %427 = vrot.lane.b32.xlu0 %v171, 64
    %v428 = vpop.permute.xlu0 %427
    %v431 = vsel %vm177, %v350, 0
    %433 = vmatprep.subr.mxu0 0.0
    %434 = vmatpush1.msra.mxu0 0.0
    %435 = vmatprep.subr.mxu0 0.0
    %436 = vmatpush1.msra.mxu0 0.0
    %437 = vmatprep.subr.mxu0 0.0
    %438 = vmatpush1.msra.mxu0 0.0
    %439 = vmatprep.subr.mxu0 0.0
    %440 = vmatpush1.msra.mxu0 0.0
    %441 = vmatprep.subr.mxu0 0.0
    %442 = vmatpush1.msra.mxu0 0.0
    %443 = vmatprep.subr.mxu0 0.0
    %444 = vmatpush1.msra.mxu0 0.0
    %445 = vmatprep.subr.mxu0 0.0
    %446 = vmatpush1.msra.mxu0 0.0
    %447 = vmatprep.subr.mxu0 0.0
    %448 = vmatpush1.msra.mxu0 0.0
    %449 = vmatprep.subr.mxu0 0.0
    %450 = vmatpush1.msra.mxu0 0.0
    %451 = vmatprep.subr.mxu0 0.0
    %452 = vmatpush1.msra.mxu0 0.0
    %453 = vmatprep.subr.mxu0 0.0
    %454 = vmatpush1.msra.mxu0 0.0
    %455 = vmatprep.subr.mxu0 0.0
    %456 = vmatpush1.msra.mxu0 0.0
    %457 = vmatprep.subr.mxu0 0.0
    %458 = vmatpush1.msra.mxu0 0.0
    %459 = vmatprep.subr.mxu0 0.0
    %460 = vmatpush1.msra.mxu0 0.0
    %461 = vmatprep.subr.mxu0 0.0
    %462 = vmatpush1.msra.mxu0 0.0
    %463 = vmatprep.subr.mxu0 0.0
    %464 = vmatpush1.msra.mxu0 %v428
    %465 = vmatprep.subr.mxu0 0.0
    %466 = vmatpush2.msra.mxu0 0.0
    %467 = vmatprep.subr.mxu0 0.0
    %468 = vmatpush2.msra.mxu0 0.0
    %469 = vmatprep.subr.mxu0 0.0
    %470 = vmatpush2.msra.mxu0 0.0
    %471 = vmatprep.subr.mxu0 0.0
    %472 = vmatpush2.msra.mxu0 0.0
    %473 = vmatprep.subr.mxu0 0.0
    %474 = vmatpush2.msra.mxu0 0.0
    %475 = vmatprep.subr.mxu0 0.0
    %476 = vmatpush2.msra.mxu0 0.0
    %477 = vmatprep.subr.mxu0 0.0
    %478 = vmatpush2.msra.mxu0 0.0
    %479 = vmatprep.subr.mxu0 0.0
    %480 = vmatpush2.msra.mxu0 0.0
    %481 = vmatprep.subr.mxu0 0.0
    %482 = vmatpush2.msra.mxu0 0.0
    %483 = vmatprep.subr.mxu0 0.0
    %484 = vmatpush2.msra.mxu0 0.0
    %485 = vmatprep.subr.mxu0 0.0
    %486 = vmatpush2.msra.mxu0 0.0
    %487 = vmatprep.subr.mxu0 0.0
    %488 = vmatpush2.msra.mxu0 0.0
    %489 = vmatprep.subr.mxu0 0.0
    %490 = vmatpush2.msra.mxu0 0.0
    %491 = vmatprep.subr.mxu0 0.0
    %492 = vmatpush2.msra.mxu0 0.0
    %493 = vmatprep.subr.mxu0 0.0
    %494 = vmatpush2.msra.mxu0 0.0
    %495 = vmatprep.subr.mxu0 0.0
    %496 = vmatpush2.msra.mxu0 0.0
    %497 = vmatprep.mubr.f32.mxu0 0.0
    %498 = vmatmul.mubr.f32.gmra.mxu0 %v431
    %v499 = vpop.f32.mrf.mxu0
    %v500 = vadd.f32 0.0, %v499
    %v501 = vpop.f32.mrf.mxu0
    %502 = vdwg.mxu0
    %503 = vrot.lane.b32.xlu0 %v166, 120
    %v504 = vpop.permute.xlu0 %503
    %505 = vrot.lane.b32.xlu0 %v166, 88
    %v506 = vpop.permute.xlu0 %505
    %v507 = vsel %vm177, %v504, 0
    %v509 = vsel %vm177, %v506, 0
    %511 = vmatprep.subr.mxu0 0.0
    %512 = vmatpush1.xpose.msra.mxu0 0.0
    %513 = vmatprep.subr.mxu0 0.0
    %514 = vmatpush1.xpose.msra.mxu0 0.0
    %515 = vmatprep.subr.mxu0 0.0
    %516 = vmatpush1.xpose.msra.mxu0 0.0
    %517 = vmatprep.subr.mxu0 0.0
    %518 = vmatpush1.xpose.msra.mxu0 0.0
    %519 = vmatprep.subr.mxu0 0.0
    %520 = vmatpush1.xpose.msra.mxu0 0.0
    %521 = vmatprep.subr.mxu0 0.0
    %522 = vmatpush1.xpose.msra.mxu0 0.0
    %523 = vmatprep.subr.mxu0 0.0
    %524 = vmatpush1.xpose.msra.mxu0 0.0
    %525 = vmatprep.subr.mxu0 0.0
    %526 = vmatpush1.xpose.msra.mxu0 0.0
    %527 = vmatprep.subr.mxu0 0.0
    %528 = vmatpush1.xpose.msra.mxu0 0.0
    %529 = vmatprep.subr.mxu0 0.0
    %530 = vmatpush1.xpose.msra.mxu0 0.0
    %531 = vmatprep.subr.mxu0 0.0
    %532 = vmatpush1.xpose.msra.mxu0 0.0
    %533 = vmatprep.subr.mxu0 0.0
    %534 = vmatpush1.xpose.msra.mxu0 0.0
    %535 = vmatprep.subr.mxu0 0.0
    %536 = vmatpush1.xpose.msra.mxu0 0.0
    %537 = vmatprep.subr.mxu0 0.0
    %538 = vmatpush1.xpose.msra.mxu0 0.0
    %539 = vmatprep.subr.mxu0 0.0
    %540 = vmatpush1.xpose.msra.mxu0 0.0
    %541 = vmatprep.subr.mxu0 0.0
    %542 = vmatpush1.xpose.msra.mxu0 %v509
    %543 = vmatprep.subr.mxu0 0.0
    %544 = vmatpush2.xpose.msra.mxu0 0.0
    %545 = vmatprep.subr.mxu0 0.0
    %546 = vmatpush2.xpose.msra.mxu0 0.0
    %547 = vmatprep.subr.mxu0 0.0
    %548 = vmatpush2.xpose.msra.mxu0 0.0
    %549 = vmatprep.subr.mxu0 0.0
    %550 = vmatpush2.xpose.msra.mxu0 0.0
    %551 = vmatprep.subr.mxu0 0.0
    %552 = vmatpush2.xpose.msra.mxu0 0.0
    %553 = vmatprep.subr.mxu0 0.0
    %554 = vmatpush2.xpose.msra.mxu0 0.0
    %555 = vmatprep.subr.mxu0 0.0
    %556 = vmatpush2.xpose.msra.mxu0 0.0
    %557 = vmatprep.subr.mxu0 0.0
    %558 = vmatpush2.xpose.msra.mxu0 0.0
    %559 = vmatprep.subr.mxu0 0.0
    %560 = vmatpush2.xpose.msra.mxu0 0.0
    %561 = vmatprep.subr.mxu0 0.0
    %562 = vmatpush2.xpose.msra.mxu0 0.0
    %563 = vmatprep.subr.mxu0 0.0
    %564 = vmatpush2.xpose.msra.mxu0 0.0
    %565 = vmatprep.subr.mxu0 0.0
    %566 = vmatpush2.xpose.msra.mxu0 0.0
    %567 = vmatprep.subr.mxu0 0.0
    %568 = vmatpush2.xpose.msra.mxu0 0.0
    %569 = vmatprep.subr.mxu0 0.0
    %570 = vmatpush2.xpose.msra.mxu0 0.0
    %571 = vmatprep.subr.mxu0 0.0
    %572 = vmatpush2.xpose.msra.mxu0 0.0
    %573 = vmatprep.subr.mxu0 0.0
    %574 = vmatpush2.xpose.msra.mxu0 0.0
    %575 = vmatprep.mubr.f32.mxu0 0.0
    %576 = vmatmul.mubr.f32.gmra.mxu0 %v507
    %v577 = vpop.f32.mrf.mxu0
    %v578 = vadd.f32 0.0, %v577
    %v579 = vpop.f32.mrf.mxu0
    %580 = vdwg.mxu0
    %581 = vrot.lane.b32.xlu0 %v171, 120
    %v582 = vpop.permute.xlu0 %581
    %583 = vrot.lane.b32.xlu0 %v171, 88
    %v584 = vpop.permute.xlu0 %583
    %v585 = vsel %vm177, %v582, 0
    %v587 = vsel %vm177, %v584, 0
    %589 = vmatprep.subr.mxu0 0.0
    %590 = vmatpush1.xpose.msra.mxu0 0.0
    %591 = vmatprep.subr.mxu0 0.0
    %592 = vmatpush1.xpose.msra.mxu0 0.0
    %593 = vmatprep.subr.mxu0 0.0
    %594 = vmatpush1.xpose.msra.mxu0 0.0
    %595 = vmatprep.subr.mxu0 0.0
    %596 = vmatpush1.xpose.msra.mxu0 0.0
    %597 = vmatprep.subr.mxu0 0.0
    %598 = vmatpush1.xpose.msra.mxu0 0.0
    %599 = vmatprep.subr.mxu0 0.0
    %600 = vmatpush1.xpose.msra.mxu0 0.0
    %601 = vmatprep.subr.mxu0 0.0
    %602 = vmatpush1.xpose.msra.mxu0 0.0
    %603 = vmatprep.subr.mxu0 0.0
    %604 = vmatpush1.xpose.msra.mxu0 0.0
    %605 = vmatprep.subr.mxu0 0.0
    %606 = vmatpush1.xpose.msra.mxu0 0.0
    %607 = vmatprep.subr.mxu0 0.0
    %608 = vmatpush1.xpose.msra.mxu0 0.0
    %609 = vmatprep.subr.mxu0 0.0
    %610 = vmatpush1.xpose.msra.mxu0 0.0
    %611 = vmatprep.subr.mxu0 0.0
    %612 = vmatpush1.xpose.msra.mxu0 0.0
    %613 = vmatprep.subr.mxu0 0.0
    %614 = vmatpush1.xpose.msra.mxu0 0.0
    %615 = vmatprep.subr.mxu0 0.0
    %616 = vmatpush1.xpose.msra.mxu0 0.0
    %617 = vmatprep.subr.mxu0 0.0
    %618 = vmatpush1.xpose.msra.mxu0 0.0
    %619 = vmatprep.subr.mxu0 0.0
    %620 = vmatpush1.xpose.msra.mxu0 %v587
    %621 = vmatprep.subr.mxu0 0.0
    %622 = vmatpush2.xpose.msra.mxu0 0.0
    %623 = vmatprep.subr.mxu0 0.0
    %624 = vmatpush2.xpose.msra.mxu0 0.0
    %625 = vmatprep.subr.mxu0 0.0
    %626 = vmatpush2.xpose.msra.mxu0 0.0
    %627 = vmatprep.subr.mxu0 0.0
    %628 = vmatpush2.xpose.msra.mxu0 0.0
    %629 = vmatprep.subr.mxu0 0.0
    %630 = vmatpush2.xpose.msra.mxu0 0.0
    %631 = vmatprep.subr.mxu0 0.0
    %632 = vmatpush2.xpose.msra.mxu0 0.0
    %633 = vmatprep.subr.mxu0 0.0
    %634 = vmatpush2.xpose.msra.mxu0 0.0
    %635 = vmatprep.subr.mxu0 0.0
    %636 = vmatpush2.xpose.msra.mxu0 0.0
    %637 = vmatprep.subr.mxu0 0.0
    %638 = vmatpush2.xpose.msra.mxu0 0.0
    %639 = vmatprep.subr.mxu0 0.0
    %640 = vmatpush2.xpose.msra.mxu0 0.0
    %641 = vmatprep.subr.mxu0 0.0
    %642 = vmatpush2.xpose.msra.mxu0 0.0
    %643 = vmatprep.subr.mxu0 0.0
    %644 = vmatpush2.xpose.msra.mxu0 0.0
    %645 = vmatprep.subr.mxu0 0.0
    %646 = vmatpush2.xpose.msra.mxu0 0.0
    %647 = vmatprep.subr.mxu0 0.0
    %648 = vmatpush2.xpose.msra.mxu0 0.0
    %649 = vmatprep.subr.mxu0 0.0
    %650 = vmatpush2.xpose.msra.mxu0 0.0
    %651 = vmatprep.subr.mxu0 0.0
    %652 = vmatpush2.xpose.msra.mxu0 0.0
    %653 = vmatprep.mubr.f32.mxu0 0.0
    %654 = vmatmul.mubr.f32.gmra.mxu0 %v585
    %v655 = vpop.f32.mrf.mxu0
    %v656 = vadd.f32 0.0, %v655
    %v657 = vpop.f32.mrf.mxu0
    %658 = vdwg.mxu0
    %v659 = vsel %vm177, %v578, -inf
    %660 = vmax.xlane.f32.xlu0 %v659
    %v661 = vpop.xlane.xlu0 %660
    %v662 = vsel %vm177, %v656, -inf
    %663 = vmax.xlane.f32.xlu0 %v662
    %v664 = vpop.xlane.xlu0 %663
    %v665 = vsub.f32 %v578, %v661
    %v666 = vsub.f32 %v656, %v664
    %v667 = vmul.f32 %v665, 1.442695
    %v668 = vpow.pop %v667
    %v669 = vmul.f32 %v666, 1.442695
    %v670 = vpow.pop %v669
    %v671 = vsel %vm177, %v668, 0.0
    %672 = vadd.xlane.f32.xlu0 %v671
    %v673 = vpop.xlane.xlu0 %672
    %v674 = vsel %vm177, %v670, 0.0
    %675 = vadd.xlane.f32.xlu0 %v674
    %v676 = vpop.xlane.xlu0 %675
    %v677 = vrcp.pop %v673
    %v678 = vrcp.pop %v676
    %v679 = vmul.f32 %v668, %v677
    %v680 = vmul.f32 %v670, %v678
    %681 = vrot.lane.b32.xlu0 %v166, 56
    %v682 = vpop.permute.xlu0 %681
    %v685 = vsel %vm177, %v679, 0
    %687 = vmatprep.subr.mxu0 0.0
    %688 = vmatpush1.msra.mxu0 0.0
    %689 = vmatprep.subr.mxu0 0.0
    %690 = vmatpush1.msra.mxu0 0.0
    %691 = vmatprep.subr.mxu0 0.0
    %692 = vmatpush1.msra.mxu0 0.0
    %693 = vmatprep.subr.mxu0 0.0
    %694 = vmatpush1.msra.mxu0 0.0
    %695 = vmatprep.subr.mxu0 0.0
    %696 = vmatpush1.msra.mxu0 0.0
    %697 = vmatprep.subr.mxu0 0.0
    %698 = vmatpush1.msra.mxu0 0.0
    %699 = vmatprep.subr.mxu0 0.0
    %700 = vmatpush1.msra.mxu0 0.0
    %701 = vmatprep.subr.mxu0 0.0
    %702 = vmatpush1.msra.mxu0 0.0
    %703 = vmatprep.subr.mxu0 0.0
    %704 = vmatpush1.msra.mxu0 0.0
    %705 = vmatprep.subr.mxu0 0.0
    %706 = vmatpush1.msra.mxu0 0.0
    %707 = vmatprep.subr.mxu0 0.0
    %708 = vmatpush1.msra.mxu0 0.0
    %709 = vmatprep.subr.mxu0 0.0
    %710 = vmatpush1.msra.mxu0 0.0
    %711 = vmatprep.subr.mxu0 0.0
    %712 = vmatpush1.msra.mxu0 0.0
    %713 = vmatprep.subr.mxu0 0.0
    %714 = vmatpush1.msra.mxu0 0.0
    %715 = vmatprep.subr.mxu0 0.0
    %716 = vmatpush1.msra.mxu0 0.0
    %717 = vmatprep.subr.mxu0 0.0
    %718 = vmatpush1.msra.mxu0 %v682
    %719 = vmatprep.subr.mxu0 0.0
    %720 = vmatpush2.msra.mxu0 0.0
    %721 = vmatprep.subr.mxu0 0.0
    %722 = vmatpush2.msra.mxu0 0.0
    %723 = vmatprep.subr.mxu0 0.0
    %724 = vmatpush2.msra.mxu0 0.0
    %725 = vmatprep.subr.mxu0 0.0
    %726 = vmatpush2.msra.mxu0 0.0
    %727 = vmatprep.subr.mxu0 0.0
    %728 = vmatpush2.msra.mxu0 0.0
    %729 = vmatprep.subr.mxu0 0.0
    %730 = vmatpush2.msra.mxu0 0.0
    %731 = vmatprep.subr.mxu0 0.0
    %732 = vmatpush2.msra.mxu0 0.0
    %733 = vmatprep.subr.mxu0 0.0
    %734 = vmatpush2.msra.mxu0 0.0
    %735 = vmatprep.subr.mxu0 0.0
    %736 = vmatpush2.msra.mxu0 0.0
    %737 = vmatprep.subr.mxu0 0.0
    %738 = vmatpush2.msra.mxu0 0.0
    %739 = vmatprep.subr.mxu0 0.0
    %740 = vmatpush2.msra.mxu0 0.0
    %741 = vmatprep.subr.mxu0 0.0
    %742 = vmatpush2.msra.mxu0 0.0
    %743 = vmatprep.subr.mxu0 0.0
    %744 = vmatpush2.msra.mxu0 0.0
    %745 = vmatprep.subr.mxu0 0.0
    %746 = vmatpush2.msra.mxu0 0.0
    %747 = vmatprep.subr.mxu0 0.0
    %748 = vmatpush2.msra.mxu0 0.0
    %749 = vmatprep.subr.mxu0 0.0
    %750 = vmatpush2.msra.mxu0 0.0
    %751 = vmatprep.mubr.f32.mxu0 0.0
    %752 = vmatmul.mubr.f32.gmra.mxu0 %v685
    %v753 = vpop.f32.mrf.mxu0
    %v754 = vadd.f32 0.0, %v753
    %v755 = vpop.f32.mrf.mxu0
    %756 = vdwg.mxu0
    %757 = vrot.lane.b32.xlu0 %v171, 56
    %v758 = vpop.permute.xlu0 %757
    %v761 = vsel %vm177, %v680, 0
    %763 = vmatprep.subr.mxu0 0.0
    %764 = vmatpush1.msra.mxu0 0.0
    %765 = vmatprep.subr.mxu0 0.0
    %766 = vmatpush1.msra.mxu0 0.0
    %767 = vmatprep.subr.mxu0 0.0
    %768 = vmatpush1.msra.mxu0 0.0
    %769 = vmatprep.subr.mxu0 0.0
    %770 = vmatpush1.msra.mxu0 0.0
    %771 = vmatprep.subr.mxu0 0.0
    %772 = vmatpush1.msra.mxu0 0.0
    %773 = vmatprep.subr.mxu0 0.0
    %774 = vmatpush1.msra.mxu0 0.0
    %775 = vmatprep.subr.mxu0 0.0
    %776 = vmatpush1.msra.mxu0 0.0
    %777 = vmatprep.subr.mxu0 0.0
    %778 = vmatpush1.msra.mxu0 0.0
    %779 = vmatprep.subr.mxu0 0.0
    %780 = vmatpush1.msra.mxu0 0.0
    %781 = vmatprep.subr.mxu0 0.0
    %782 = vmatpush1.msra.mxu0 0.0
    %783 = vmatprep.subr.mxu0 0.0
    %784 = vmatpush1.msra.mxu0 0.0
    %785 = vmatprep.subr.mxu0 0.0
    %786 = vmatpush1.msra.mxu0 0.0
    %787 = vmatprep.subr.mxu0 0.0
    %788 = vmatpush1.msra.mxu0 0.0
    %789 = vmatprep.subr.mxu0 0.0
    %790 = vmatpush1.msra.mxu0 0.0
    %791 = vmatprep.subr.mxu0 0.0
    %792 = vmatpush1.msra.mxu0 0.0
    %793 = vmatprep.subr.mxu0 0.0
    %794 = vmatpush1.msra.mxu0 %v758
    %795 = vmatprep.subr.mxu0 0.0
    %796 = vmatpush2.msra.mxu0 0.0
    %797 = vmatprep.subr.mxu0 0.0
    %798 = vmatpush2.msra.mxu0 0.0
    %799 = vmatprep.subr.mxu0 0.0
    %800 = vmatpush2.msra.mxu0 0.0
    %801 = vmatprep.subr.mxu0 0.0
    %802 = vmatpush2.msra.mxu0 0.0
    %803 = vmatprep.subr.mxu0 0.0
    %804 = vmatpush2.msra.mxu0 0.0
    %805 = vmatprep.subr.mxu0 0.0
    %806 = vmatpush2.msra.mxu0 0.0
    %807 = vmatprep.subr.mxu0 0.0
    %808 = vmatpush2.msra.mxu0 0.0
    %809 = vmatprep.subr.mxu0 0.0
    %810 = vmatpush2.msra.mxu0 0.0
    %811 = vmatprep.subr.mxu0 0.0
    %812 = vmatpush2.msra.mxu0 0.0
    %813 = vmatprep.subr.mxu0 0.0
    %814 = vmatpush2.msra.mxu0 0.0
    %815 = vmatprep.subr.mxu0 0.0
    %816 = vmatpush2.msra.mxu0 0.0
    %817 = vmatprep.subr.mxu0 0.0
    %818 = vmatpush2.msra.mxu0 0.0
    %819 = vmatprep.subr.mxu0 0.0
    %820 = vmatpush2.msra.mxu0 0.0
    %821 = vmatprep.subr.mxu0 0.0
    %822 = vmatpush2.msra.mxu0 0.0
    %823 = vmatprep.subr.mxu0 0.0
    %824 = vmatpush2.msra.mxu0 0.0
    %825 = vmatprep.subr.mxu0 0.0
    %826 = vmatpush2.msra.mxu0 0.0
    %827 = vmatprep.mubr.f32.mxu0 0.0
    %828 = vmatmul.mubr.f32.gmra.mxu0 %v761
    %v829 = vpop.f32.mrf.mxu0
    %v830 = vadd.f32 0.0, %v829
    %v831 = vpop.f32.mrf.mxu0
    %832 = vdwg.mxu0
    %833 = vrot.lane.b32.xlu0 %v166, 112
    %v834 = vpop.permute.xlu0 %833
    %835 = vrot.lane.b32.xlu0 %v166, 80
    %v836 = vpop.permute.xlu0 %835
    %v837 = vsel %vm177, %v834, 0
    %v839 = vsel %vm177, %v836, 0
    %841 = vmatprep.subr.mxu0 0.0
    %842 = vmatpush1.xpose.msra.mxu0 0.0
    %843 = vmatprep.subr.mxu0 0.0
    %844 = vmatpush1.xpose.msra.mxu0 0.0
    %845 = vmatprep.subr.mxu0 0.0
    %846 = vmatpush1.xpose.msra.mxu0 0.0
    %847 = vmatprep.subr.mxu0 0.0
    %848 = vmatpush1.xpose.msra.mxu0 0.0
    %849 = vmatprep.subr.mxu0 0.0
    %850 = vmatpush1.xpose.msra.mxu0 0.0
    %851 = vmatprep.subr.mxu0 0.0
    %852 = vmatpush1.xpose.msra.mxu0 0.0
    %853 = vmatprep.subr.mxu0 0.0
    %854 = vmatpush1.xpose.msra.mxu0 0.0
    %855 = vmatprep.subr.mxu0 0.0
    %856 = vmatpush1.xpose.msra.mxu0 0.0
    %857 = vmatprep.subr.mxu0 0.0
    %858 = vmatpush1.xpose.msra.mxu0 0.0
    %859 = vmatprep.subr.mxu0 0.0
    %860 = vmatpush1.xpose.msra.mxu0 0.0
    %861 = vmatprep.subr.mxu0 0.0
    %862 = vmatpush1.xpose.msra.mxu0 0.0
    %863 = vmatprep.subr.mxu0 0.0
    %864 = vmatpush1.xpose.msra.mxu0 0.0
    %865 = vmatprep.subr.mxu0 0.0
    %866 = vmatpush1.xpose.msra.mxu0 0.0
    %867 = vmatprep.subr.mxu0 0.0
    %868 = vmatpush1.xpose.msra.mxu0 0.0
    %869 = vmatprep.subr.mxu0 0.0
    %870 = vmatpush1.xpose.msra.mxu0 0.0
    %871 = vmatprep.subr.mxu0 0.0
    %872 = vmatpush1.xpose.msra.mxu0 %v839
    %873 = vmatprep.subr.mxu0 0.0
    %874 = vmatpush2.xpose.msra.mxu0 0.0
    %875 = vmatprep.subr.mxu0 0.0
    %876 = vmatpush2.xpose.msra.mxu0 0.0
    %877 = vmatprep.subr.mxu0 0.0
    %878 = vmatpush2.xpose.msra.mxu0 0.0
    %879 = vmatprep.subr.mxu0 0.0
    %880 = vmatpush2.xpose.msra.mxu0 0.0
    %881 = vmatprep.subr.mxu0 0.0
    %882 = vmatpush2.xpose.msra.mxu0 0.0
    %883 = vmatprep.subr.mxu0 0.0
    %884 = vmatpush2.xpose.msra.mxu0 0.0
    %885 = vmatprep.subr.mxu0 0.0
    %886 = vmatpush2.xpose.msra.mxu0 0.0
    %887 = vmatprep.subr.mxu0 0.0
    %888 = vmatpush2.xpose.msra.mxu0 0.0
    %889 = vmatprep.subr.mxu0 0.0
    %890 = vmatpush2.xpose.msra.mxu0 0.0
    %891 = vmatprep.subr.mxu0 0.0
    %892 = vmatpush2.xpose.msra.mxu0 0.0
    %893 = vmatprep.subr.mxu0 0.0
    %894 = vmatpush2.xpose.msra.mxu0 0.0
    %895 = vmatprep.subr.mxu0 0.0
    %896 = vmatpush2.xpose.msra.mxu0 0.0
    %897 = vmatprep.subr.mxu0 0.0
    %898 = vmatpush2.xpose.msra.mxu0 0.0
    %899 = vmatprep.subr.mxu0 0.0
    %900 = vmatpush2.xpose.msra.mxu0 0.0
    %901 = vmatprep.subr.mxu0 0.0
    %902 = vmatpush2.xpose.msra.mxu0 0.0
    %903 = vmatprep.subr.mxu0 0.0
    %904 = vmatpush2.xpose.msra.mxu0 0.0
    %905 = vmatprep.mubr.f32.mxu0 0.0
    %906 = vmatmul.mubr.f32.gmra.mxu0 %v837
    %v907 = vpop.f32.mrf.mxu0
    %v908 = vadd.f32 0.0, %v907
    %v909 = vpop.f32.mrf.mxu0
    %910 = vdwg.mxu0
    %911 = vrot.lane.b32.xlu0 %v171, 112
    %v912 = vpop.permute.xlu0 %911
    %913 = vrot.lane.b32.xlu0 %v171, 80
    %v914 = vpop.permute.xlu0 %913
    %v915 = vsel %vm177, %v912, 0
    %v917 = vsel %vm177, %v914, 0
    %919 = vmatprep.subr.mxu0 0.0
    %920 = vmatpush1.xpose.msra.mxu0 0.0
    %921 = vmatprep.subr.mxu0 0.0
    %922 = vmatpush1.xpose.msra.mxu0 0.0
    %923 = vmatprep.subr.mxu0 0.0
    %924 = vmatpush1.xpose.msra.mxu0 0.0
    %925 = vmatprep.subr.mxu0 0.0
    %926 = vmatpush1.xpose.msra.mxu0 0.0
    %927 = vmatprep.subr.mxu0 0.0
    %928 = vmatpush1.xpose.msra.mxu0 0.0
    %929 = vmatprep.subr.mxu0 0.0
    %930 = vmatpush1.xpose.msra.mxu0 0.0
    %931 = vmatprep.subr.mxu0 0.0
    %932 = vmatpush1.xpose.msra.mxu0 0.0
    %933 = vmatprep.subr.mxu0 0.0
    %934 = vmatpush1.xpose.msra.mxu0 0.0
    %935 = vmatprep.subr.mxu0 0.0
    %936 = vmatpush1.xpose.msra.mxu0 0.0
    %937 = vmatprep.subr.mxu0 0.0
    %938 = vmatpush1.xpose.msra.mxu0 0.0
    %939 = vmatprep.subr.mxu0 0.0
    %940 = vmatpush1.xpose.msra.mxu0 0.0
    %941 = vmatprep.subr.mxu0 0.0
    %942 = vmatpush1.xpose.msra.mxu0 0.0
    %943 = vmatprep.subr.mxu0 0.0
    %944 = vmatpush1.xpose.msra.mxu0 0.0
    %945 = vmatprep.subr.mxu0 0.0
    %946 = vmatpush1.xpose.msra.mxu0 0.0
    %947 = vmatprep.subr.mxu0 0.0
    %948 = vmatpush1.xpose.msra.mxu0 0.0
    %949 = vmatprep.subr.mxu0 0.0
    %950 = vmatpush1.xpose.msra.mxu0 %v917
    %951 = vmatprep.subr.mxu0 0.0
    %952 = vmatpush2.xpose.msra.mxu0 0.0
    %953 = vmatprep.subr.mxu0 0.0
    %954 = vmatpush2.xpose.msra.mxu0 0.0
    %955 = vmatprep.subr.mxu0 0.0
    %956 = vmatpush2.xpose.msra.mxu0 0.0
    %957 = vmatprep.subr.mxu0 0.0
    %958 = vmatpush2.xpose.msra.mxu0 0.0
    %959 = vmatprep.subr.mxu0 0.0
    %960 = vmatpush2.xpose.msra.mxu0 0.0
    %961 = vmatprep.subr.mxu0 0.0
    %962 = vmatpush2.xpose.msra.mxu0 0.0
    %963 = vmatprep.subr.mxu0 0.0
    %964 = vmatpush2.xpose.msra.mxu0 0.0
    %965 = vmatprep.subr.mxu0 0.0
    %966 = vmatpush2.xpose.msra.mxu0 0.0
    %967 = vmatprep.subr.mxu0 0.0
    %968 = vmatpush2.xpose.msra.mxu0 0.0
    %969 = vmatprep.subr.mxu0 0.0
    %970 = vmatpush2.xpose.msra.mxu0 0.0
    %971 = vmatprep.subr.mxu0 0.0
    %972 = vmatpush2.xpose.msra.mxu0 0.0
    %973 = vmatprep.subr.mxu0 0.0
    %974 = vmatpush2.xpose.msra.mxu0 0.0
    %975 = vmatprep.subr.mxu0 0.0
    %976 = vmatpush2.xpose.msra.mxu0 0.0
    %977 = vmatprep.subr.mxu0 0.0
    %978 = vmatpush2.xpose.msra.mxu0 0.0
    %979 = vmatprep.subr.mxu0 0.0
    %980 = vmatpush2.xpose.msra.mxu0 0.0
    %981 = vmatprep.subr.mxu0 0.0
    %982 = vmatpush2.xpose.msra.mxu0 0.0
    %983 = vmatprep.mubr.f32.mxu0 0.0
    %984 = vmatmul.mubr.f32.gmra.mxu0 %v915
    %v985 = vpop.f32.mrf.mxu0
    %v986 = vadd.f32 0.0, %v985
    %v987 = vpop.f32.mrf.mxu0
    %988 = vdwg.mxu0
    %v989 = vsel %vm177, %v908, -inf
    %990 = vmax.xlane.f32.xlu0 %v989
    %v991 = vpop.xlane.xlu0 %990
    %v992 = vsel %vm177, %v986, -inf
    %993 = vmax.xlane.f32.xlu0 %v992
    %v994 = vpop.xlane.xlu0 %993
    %v995 = vsub.f32 %v908, %v991
    %v996 = vsub.f32 %v986, %v994
    %v997 = vmul.f32 %v995, 1.442695
    %v998 = vpow.pop %v997
    %v999 = vmul.f32 %v996, 1.442695
    %v1000 = vpow.pop %v999
    %v1001 = vsel %vm177, %v998, 0.0
    %1002 = vadd.xlane.f32.xlu0 %v1001
    %v1003 = vpop.xlane.xlu0 %1002
    %v1004 = vsel %vm177, %v1000, 0.0
    %1005 = vadd.xlane.f32.xlu0 %v1004
    %v1006 = vpop.xlane.xlu0 %1005
    %v1007 = vrcp.pop %v1003
    %v1008 = vrcp.pop %v1006
    %v1009 = vmul.f32 %v998, %v1007
    %v1010 = vmul.f32 %v1000, %v1008
    %1011 = vrot.lane.b32.xlu0 %v166, 48
    %v1012 = vpop.permute.xlu0 %1011
    %v1015 = vsel %vm177, %v1009, 0
    %1017 = vmatprep.subr.mxu0 0.0
    %1018 = vmatpush1.msra.mxu0 0.0
    %1019 = vmatprep.subr.mxu0 0.0
    %1020 = vmatpush1.msra.mxu0 0.0
    %1021 = vmatprep.subr.mxu0 0.0
    %1022 = vmatpush1.msra.mxu0 0.0
    %1023 = vmatprep.subr.mxu0 0.0
    %1024 = vmatpush1.msra.mxu0 0.0
    %1025 = vmatprep.subr.mxu0 0.0
    %1026 = vmatpush1.msra.mxu0 0.0
    %1027 = vmatprep.subr.mxu0 0.0
    %1028 = vmatpush1.msra.mxu0 0.0
    %1029 = vmatprep.subr.mxu0 0.0
    %1030 = vmatpush1.msra.mxu0 0.0
    %1031 = vmatprep.subr.mxu0 0.0
    %1032 = vmatpush1.msra.mxu0 0.0
    %1033 = vmatprep.subr.mxu0 0.0
    %1034 = vmatpush1.msra.mxu0 0.0
    %1035 = vmatprep.subr.mxu0 0.0
    %1036 = vmatpush1.msra.mxu0 0.0
    %1037 = vmatprep.subr.mxu0 0.0
    %1038 = vmatpush1.msra.mxu0 0.0
    %1039 = vmatprep.subr.mxu0 0.0
    %1040 = vmatpush1.msra.mxu0 0.0
    %1041 = vmatprep.subr.mxu0 0.0
    %1042 = vmatpush1.msra.mxu0 0.0
    %1043 = vmatprep.subr.mxu0 0.0
    %1044 = vmatpush1.msra.mxu0 0.0
    %1045 = vmatprep.subr.mxu0 0.0
    %1046 = vmatpush1.msra.mxu0 0.0
    %1047 = vmatprep.subr.mxu0 0.0
    %1048 = vmatpush1.msra.mxu0 %v1012
    %1049 = vmatprep.subr.mxu0 0.0
    %1050 = vmatpush2.msra.mxu0 0.0
    %1051 = vmatprep.subr.mxu0 0.0
    %1052 = vmatpush2.msra.mxu0 0.0
    %1053 = vmatprep.subr.mxu0 0.0
    %1054 = vmatpush2.msra.mxu0 0.0
    %1055 = vmatprep.subr.mxu0 0.0
    %1056 = vmatpush2.msra.mxu0 0.0
    %1057 = vmatprep.subr.mxu0 0.0
    %1058 = vmatpush2.msra.mxu0 0.0
    %1059 = vmatprep.subr.mxu0 0.0
    %1060 = vmatpush2.msra.mxu0 0.0
    %1061 = vmatprep.subr.mxu0 0.0
    %1062 = vmatpush2.msra.mxu0 0.0
    %1063 = vmatprep.subr.mxu0 0.0
    %1064 = vmatpush2.msra.mxu0 0.0
    %1065 = vmatprep.subr.mxu0 0.0
    %1066 = vmatpush2.msra.mxu0 0.0
    %1067 = vmatprep.subr.mxu0 0.0
    %1068 = vmatpush2.msra.mxu0 0.0
    %1069 = vmatprep.subr.mxu0 0.0
    %1070 = vmatpush2.msra.mxu0 0.0
    %1071 = vmatprep.subr.mxu0 0.0
    %1072 = vmatpush2.msra.mxu0 0.0
    %1073 = vmatprep.subr.mxu0 0.0
    %1074 = vmatpush2.msra.mxu0 0.0
    %1075 = vmatprep.subr.mxu0 0.0
    %1076 = vmatpush2.msra.mxu0 0.0
    %1077 = vmatprep.subr.mxu0 0.0
    %1078 = vmatpush2.msra.mxu0 0.0
    %1079 = vmatprep.subr.mxu0 0.0
    %1080 = vmatpush2.msra.mxu0 0.0
    %1081 = vmatprep.mubr.f32.mxu0 0.0
    %1082 = vmatmul.mubr.f32.gmra.mxu0 %v1015
    %v1083 = vpop.f32.mrf.mxu0
    %v1084 = vadd.f32 0.0, %v1083
    %v1085 = vpop.f32.mrf.mxu0
    %1086 = vdwg.mxu0
    %1087 = vrot.lane.b32.xlu0 %v171, 48
    %v1088 = vpop.permute.xlu0 %1087
    %v1091 = vsel %vm177, %v1010, 0
    %1093 = vmatprep.subr.mxu0 0.0
    %1094 = vmatpush1.msra.mxu0 0.0
    %1095 = vmatprep.subr.mxu0 0.0
    %1096 = vmatpush1.msra.mxu0 0.0
    %1097 = vmatprep.subr.mxu0 0.0
    %1098 = vmatpush1.msra.mxu0 0.0
    %1099 = vmatprep.subr.mxu0 0.0
    %1100 = vmatpush1.msra.mxu0 0.0
    %1101 = vmatprep.subr.mxu0 0.0
    %1102 = vmatpush1.msra.mxu0 0.0
    %1103 = vmatprep.subr.mxu0 0.0
    %1104 = vmatpush1.msra.mxu0 0.0
    %1105 = vmatprep.subr.mxu0 0.0
    %1106 = vmatpush1.msra.mxu0 0.0
    %1107 = vmatprep.subr.mxu0 0.0
    %1108 = vmatpush1.msra.mxu0 0.0
    %1109 = vmatprep.subr.mxu0 0.0
    %1110 = vmatpush1.msra.mxu0 0.0
    %1111 = vmatprep.subr.mxu0 0.0
    %1112 = vmatpush1.msra.mxu0 0.0
    %1113 = vmatprep.subr.mxu0 0.0
    %1114 = vmatpush1.msra.mxu0 0.0
    %1115 = vmatprep.subr.mxu0 0.0
    %1116 = vmatpush1.msra.mxu0 0.0
    %1117 = vmatprep.subr.mxu0 0.0
    %1118 = vmatpush1.msra.mxu0 0.0
    %1119 = vmatprep.subr.mxu0 0.0
    %1120 = vmatpush1.msra.mxu0 0.0
    %1121 = vmatprep.subr.mxu0 0.0
    %1122 = vmatpush1.msra.mxu0 0.0
    %1123 = vmatprep.subr.mxu0 0.0
    %1124 = vmatpush1.msra.mxu0 %v1088
    %1125 = vmatprep.subr.mxu0 0.0
    %1126 = vmatpush2.msra.mxu0 0.0
    %1127 = vmatprep.subr.mxu0 0.0
    %1128 = vmatpush2.msra.mxu0 0.0
    %1129 = vmatprep.subr.mxu0 0.0
    %1130 = vmatpush2.msra.mxu0 0.0
    %1131 = vmatprep.subr.mxu0 0.0
    %1132 = vmatpush2.msra.mxu0 0.0
    %1133 = vmatprep.subr.mxu0 0.0
    %1134 = vmatpush2.msra.mxu0 0.0
    %1135 = vmatprep.subr.mxu0 0.0
    %1136 = vmatpush2.msra.mxu0 0.0
    %1137 = vmatprep.subr.mxu0 0.0
    %1138 = vmatpush2.msra.mxu0 0.0
    %1139 = vmatprep.subr.mxu0 0.0
    %1140 = vmatpush2.msra.mxu0 0.0
    %1141 = vmatprep.subr.mxu0 0.0
    %1142 = vmatpush2.msra.mxu0 0.0
    %1143 = vmatprep.subr.mxu0 0.0
    %1144 = vmatpush2.msra.mxu0 0.0
    %1145 = vmatprep.subr.mxu0 0.0
    %1146 = vmatpush2.msra.mxu0 0.0
    %1147 = vmatprep.subr.mxu0 0.0
    %1148 = vmatpush2.msra.mxu0 0.0
    %1149 = vmatprep.subr.mxu0 0.0
    %1150 = vmatpush2.msra.mxu0 0.0
    %1151 = vmatprep.subr.mxu0 0.0
    %1152 = vmatpush2.msra.mxu0 0.0
    %1153 = vmatprep.subr.mxu0 0.0
    %1154 = vmatpush2.msra.mxu0 0.0
    %1155 = vmatprep.subr.mxu0 0.0
    %1156 = vmatpush2.msra.mxu0 0.0
    %1157 = vmatprep.mubr.f32.mxu0 0.0
    %1158 = vmatmul.mubr.f32.gmra.mxu0 %v1091
    %v1159 = vpop.f32.mrf.mxu0
    %v1160 = vadd.f32 0.0, %v1159
    %v1161 = vpop.f32.mrf.mxu0
    %1162 = vdwg.mxu0
    %1163 = vrot.lane.b32.xlu0 %v166, 104
    %v1164 = vpop.permute.xlu0 %1163
    %1165 = vrot.lane.b32.xlu0 %v166, 72
    %v1166 = vpop.permute.xlu0 %1165
    %v1167 = vsel %vm177, %v1164, 0
    %v1169 = vsel %vm177, %v1166, 0
    %1171 = vmatprep.subr.mxu0 0.0
    %1172 = vmatpush1.xpose.msra.mxu0 0.0
    %1173 = vmatprep.subr.mxu0 0.0
    %1174 = vmatpush1.xpose.msra.mxu0 0.0
    %1175 = vmatprep.subr.mxu0 0.0
    %1176 = vmatpush1.xpose.msra.mxu0 0.0
    %1177 = vmatprep.subr.mxu0 0.0
    %1178 = vmatpush1.xpose.msra.mxu0 0.0
    %1179 = vmatprep.subr.mxu0 0.0
    %1180 = vmatpush1.xpose.msra.mxu0 0.0
    %1181 = vmatprep.subr.mxu0 0.0
    %1182 = vmatpush1.xpose.msra.mxu0 0.0
    %1183 = vmatprep.subr.mxu0 0.0
    %1184 = vmatpush1.xpose.msra.mxu0 0.0
    %1185 = vmatprep.subr.mxu0 0.0
    %1186 = vmatpush1.xpose.msra.mxu0 0.0
    %1187 = vmatprep.subr.mxu0 0.0
    %1188 = vmatpush1.xpose.msra.mxu0 0.0
    %1189 = vmatprep.subr.mxu0 0.0
    %1190 = vmatpush1.xpose.msra.mxu0 0.0
    %1191 = vmatprep.subr.mxu0 0.0
    %1192 = vmatpush1.xpose.msra.mxu0 0.0
    %1193 = vmatprep.subr.mxu0 0.0
    %1194 = vmatpush1.xpose.msra.mxu0 0.0
    %1195 = vmatprep.subr.mxu0 0.0
    %1196 = vmatpush1.xpose.msra.mxu0 0.0
    %1197 = vmatprep.subr.mxu0 0.0
    %1198 = vmatpush1.xpose.msra.mxu0 0.0
    %1199 = vmatprep.subr.mxu0 0.0
    %1200 = vmatpush1.xpose.msra.mxu0 0.0
    %1201 = vmatprep.subr.mxu0 0.0
    %1202 = vmatpush1.xpose.msra.mxu0 %v1169
    %1203 = vmatprep.subr.mxu0 0.0
    %1204 = vmatpush2.xpose.msra.mxu0 0.0
    %1205 = vmatprep.subr.mxu0 0.0
    %1206 = vmatpush2.xpose.msra.mxu0 0.0
    %1207 = vmatprep.subr.mxu0 0.0
    %1208 = vmatpush2.xpose.msra.mxu0 0.0
    %1209 = vmatprep.subr.mxu0 0.0
    %1210 = vmatpush2.xpose.msra.mxu0 0.0
    %1211 = vmatprep.subr.mxu0 0.0
    %1212 = vmatpush2.xpose.msra.mxu0 0.0
    %1213 = vmatprep.subr.mxu0 0.0
    %1214 = vmatpush2.xpose.msra.mxu0 0.0
    %1215 = vmatprep.subr.mxu0 0.0
    %1216 = vmatpush2.xpose.msra.mxu0 0.0
    %1217 = vmatprep.subr.mxu0 0.0
    %1218 = vmatpush2.xpose.msra.mxu0 0.0
    %1219 = vmatprep.subr.mxu0 0.0
    %1220 = vmatpush2.xpose.msra.mxu0 0.0
    %1221 = vmatprep.subr.mxu0 0.0
    %1222 = vmatpush2.xpose.msra.mxu0 0.0
    %1223 = vmatprep.subr.mxu0 0.0
    %1224 = vmatpush2.xpose.msra.mxu0 0.0
    %1225 = vmatprep.subr.mxu0 0.0
    %1226 = vmatpush2.xpose.msra.mxu0 0.0
    %1227 = vmatprep.subr.mxu0 0.0
    %1228 = vmatpush2.xpose.msra.mxu0 0.0
    %1229 = vmatprep.subr.mxu0 0.0
    %1230 = vmatpush2.xpose.msra.mxu0 0.0
    %1231 = vmatprep.subr.mxu0 0.0
    %1232 = vmatpush2.xpose.msra.mxu0 0.0
    %1233 = vmatprep.subr.mxu0 0.0
    %1234 = vmatpush2.xpose.msra.mxu0 0.0
    %1235 = vmatprep.mubr.f32.mxu0 0.0
    %1236 = vmatmul.mubr.f32.gmra.mxu0 %v1167
    %v1237 = vpop.f32.mrf.mxu0
    %v1238 = vadd.f32 0.0, %v1237
    %v1239 = vpop.f32.mrf.mxu0
    %1240 = vdwg.mxu0
    %1241 = vrot.lane.b32.xlu0 %v171, 104
    %v1242 = vpop.permute.xlu0 %1241
    %1243 = vrot.lane.b32.xlu0 %v171, 72
    %v1244 = vpop.permute.xlu0 %1243
    %v1245 = vsel %vm177, %v1242, 0
    %v1247 = vsel %vm177, %v1244, 0
    %1249 = vmatprep.subr.mxu0 0.0
    %1250 = vmatpush1.xpose.msra.mxu0 0.0
    %1251 = vmatprep.subr.mxu0 0.0
    %1252 = vmatpush1.xpose.msra.mxu0 0.0
    %1253 = vmatprep.subr.mxu0 0.0
    %1254 = vmatpush1.xpose.msra.mxu0 0.0
    %1255 = vmatprep.subr.mxu0 0.0
    %1256 = vmatpush1.xpose.msra.mxu0 0.0
    %1257 = vmatprep.subr.mxu0 0.0
    %1258 = vmatpush1.xpose.msra.mxu0 0.0
    %1259 = vmatprep.subr.mxu0 0.0
    %1260 = vmatpush1.xpose.msra.mxu0 0.0
    %1261 = vmatprep.subr.mxu0 0.0
    %1262 = vmatpush1.xpose.msra.mxu0 0.0
    %1263 = vmatprep.subr.mxu0 0.0
    %1264 = vmatpush1.xpose.msra.mxu0 0.0
    %1265 = vmatprep.subr.mxu0 0.0
    %1266 = vmatpush1.xpose.msra.mxu0 0.0
    %1267 = vmatprep.subr.mxu0 0.0
    %1268 = vmatpush1.xpose.msra.mxu0 0.0
    %1269 = vmatprep.subr.mxu0 0.0
    %1270 = vmatpush1.xpose.msra.mxu0 0.0
    %1271 = vmatprep.subr.mxu0 0.0
    %1272 = vmatpush1.xpose.msra.mxu0 0.0
    %1273 = vmatprep.subr.mxu0 0.0
    %1274 = vmatpush1.xpose.msra.mxu0 0.0
    %1275 = vmatprep.subr.mxu0 0.0
    %1276 = vmatpush1.xpose.msra.mxu0 0.0
    %1277 = vmatprep.subr.mxu0 0.0
    %1278 = vmatpush1.xpose.msra.mxu0 0.0
    %1279 = vmatprep.subr.mxu0 0.0
    %1280 = vmatpush1.xpose.msra.mxu0 %v1247
    %1281 = vmatprep.subr.mxu0 0.0
    %1282 = vmatpush2.xpose.msra.mxu0 0.0
    %1283 = vmatprep.subr.mxu0 0.0
    %1284 = vmatpush2.xpose.msra.mxu0 0.0
    %1285 = vmatprep.subr.mxu0 0.0
    %1286 = vmatpush2.xpose.msra.mxu0 0.0
    %1287 = vmatprep.subr.mxu0 0.0
    %1288 = vmatpush2.xpose.msra.mxu0 0.0
    %1289 = vmatprep.subr.mxu0 0.0
    %1290 = vmatpush2.xpose.msra.mxu0 0.0
    %1291 = vmatprep.subr.mxu0 0.0
    %1292 = vmatpush2.xpose.msra.mxu0 0.0
    %1293 = vmatprep.subr.mxu0 0.0
    %1294 = vmatpush2.xpose.msra.mxu0 0.0
    %1295 = vmatprep.subr.mxu0 0.0
    %1296 = vmatpush2.xpose.msra.mxu0 0.0
    %1297 = vmatprep.subr.mxu0 0.0
    %1298 = vmatpush2.xpose.msra.mxu0 0.0
    %1299 = vmatprep.subr.mxu0 0.0
    %1300 = vmatpush2.xpose.msra.mxu0 0.0
    %1301 = vmatprep.subr.mxu0 0.0
    %1302 = vmatpush2.xpose.msra.mxu0 0.0
    %1303 = vmatprep.subr.mxu0 0.0
    %1304 = vmatpush2.xpose.msra.mxu0 0.0
    %1305 = vmatprep.subr.mxu0 0.0
    %1306 = vmatpush2.xpose.msra.mxu0 0.0
    %1307 = vmatprep.subr.mxu0 0.0
    %1308 = vmatpush2.xpose.msra.mxu0 0.0
    %1309 = vmatprep.subr.mxu0 0.0
    %1310 = vmatpush2.xpose.msra.mxu0 0.0
    %1311 = vmatprep.subr.mxu0 0.0
    %1312 = vmatpush2.xpose.msra.mxu0 0.0
    %1313 = vmatprep.mubr.f32.mxu0 0.0
    %1314 = vmatmul.mubr.f32.gmra.mxu0 %v1245
    %v1315 = vpop.f32.mrf.mxu0
    %v1316 = vadd.f32 0.0, %v1315
    %v1317 = vpop.f32.mrf.mxu0
    %1318 = vdwg.mxu0
    %v1319 = vsel %vm177, %v1238, -inf
    %1320 = vmax.xlane.f32.xlu0 %v1319
    %v1321 = vpop.xlane.xlu0 %1320
    %v1322 = vsel %vm177, %v1316, -inf
    %1323 = vmax.xlane.f32.xlu0 %v1322
    %v1324 = vpop.xlane.xlu0 %1323
    %v1325 = vsub.f32 %v1238, %v1321
    %v1326 = vsub.f32 %v1316, %v1324
    %v1327 = vmul.f32 %v1325, 1.442695
    %v1328 = vpow.pop %v1327
    %v1329 = vmul.f32 %v1326, 1.442695
    %v1330 = vpow.pop %v1329
    %v1331 = vsel %vm177, %v1328, 0.0
    %1332 = vadd.xlane.f32.xlu0 %v1331
    %v1333 = vpop.xlane.xlu0 %1332
    %v1334 = vsel %vm177, %v1330, 0.0
    %1335 = vadd.xlane.f32.xlu0 %v1334
    %v1336 = vpop.xlane.xlu0 %1335
    %v1337 = vrcp.pop %v1333
    %v1338 = vrcp.pop %v1336
    %v1339 = vmul.f32 %v1328, %v1337
    %v1340 = vmul.f32 %v1330, %v1338
    %1341 = vrot.lane.b32.xlu0 %v166, 40
    %v1342 = vpop.permute.xlu0 %1341
    %v1345 = vsel %vm177, %v1339, 0
    %1347 = vmatprep.subr.mxu0 0.0
    %1348 = vmatpush1.msra.mxu0 0.0
    %1349 = vmatprep.subr.mxu0 0.0
    %1350 = vmatpush1.msra.mxu0 0.0
    %1351 = vmatprep.subr.mxu0 0.0
    %1352 = vmatpush1.msra.mxu0 0.0
    %1353 = vmatprep.subr.mxu0 0.0
    %1354 = vmatpush1.msra.mxu0 0.0
    %1355 = vmatprep.subr.mxu0 0.0
    %1356 = vmatpush1.msra.mxu0 0.0
    %1357 = vmatprep.subr.mxu0 0.0
    %1358 = vmatpush1.msra.mxu0 0.0
    %1359 = vmatprep.subr.mxu0 0.0
    %1360 = vmatpush1.msra.mxu0 0.0
    %1361 = vmatprep.subr.mxu0 0.0
    %1362 = vmatpush1.msra.mxu0 0.0
    %1363 = vmatprep.subr.mxu0 0.0
    %1364 = vmatpush1.msra.mxu0 0.0
    %1365 = vmatprep.subr.mxu0 0.0
    %1366 = vmatpush1.msra.mxu0 0.0
    %1367 = vmatprep.subr.mxu0 0.0
    %1368 = vmatpush1.msra.mxu0 0.0
    %1369 = vmatprep.subr.mxu0 0.0
    %1370 = vmatpush1.msra.mxu0 0.0
    %1371 = vmatprep.subr.mxu0 0.0
    %1372 = vmatpush1.msra.mxu0 0.0
    %1373 = vmatprep.subr.mxu0 0.0
    %1374 = vmatpush1.msra.mxu0 0.0
    %1375 = vmatprep.subr.mxu0 0.0
    %1376 = vmatpush1.msra.mxu0 0.0
    %1377 = vmatprep.subr.mxu0 0.0
    %1378 = vmatpush1.msra.mxu0 %v1342
    %1379 = vmatprep.subr.mxu0 0.0
    %1380 = vmatpush2.msra.mxu0 0.0
    %1381 = vmatprep.subr.mxu0 0.0
    %1382 = vmatpush2.msra.mxu0 0.0
    %1383 = vmatprep.subr.mxu0 0.0
    %1384 = vmatpush2.msra.mxu0 0.0
    %1385 = vmatprep.subr.mxu0 0.0
    %1386 = vmatpush2.msra.mxu0 0.0
    %1387 = vmatprep.subr.mxu0 0.0
    %1388 = vmatpush2.msra.mxu0 0.0
    %1389 = vmatprep.subr.mxu0 0.0
    %1390 = vmatpush2.msra.mxu0 0.0
    %1391 = vmatprep.subr.mxu0 0.0
    %1392 = vmatpush2.msra.mxu0 0.0
    %1393 = vmatprep.subr.mxu0 0.0
    %1394 = vmatpush2.msra.mxu0 0.0
    %1395 = vmatprep.subr.mxu0 0.0
    %1396 = vmatpush2.msra.mxu0 0.0
    %1397 = vmatprep.subr.mxu0 0.0
    %1398 = vmatpush2.msra.mxu0 0.0
    %1399 = vmatprep.subr.mxu0 0.0
    %1400 = vmatpush2.msra.mxu0 0.0
    %1401 = vmatprep.subr.mxu0 0.0
    %1402 = vmatpush2.msra.mxu0 0.0
    %1403 = vmatprep.subr.mxu0 0.0
    %1404 = vmatpush2.msra.mxu0 0.0
    %1405 = vmatprep.subr.mxu0 0.0
    %1406 = vmatpush2.msra.mxu0 0.0
    %1407 = vmatprep.subr.mxu0 0.0
    %1408 = vmatpush2.msra.mxu0 0.0
    %1409 = vmatprep.subr.mxu0 0.0
    %1410 = vmatpush2.msra.mxu0 0.0
    %1411 = vmatprep.mubr.f32.mxu0 0.0
    %1412 = vmatmul.mubr.f32.gmra.mxu0 %v1345
    %v1413 = vpop.f32.mrf.mxu0
    %v1414 = vadd.f32 0.0, %v1413
    %v1415 = vpop.f32.mrf.mxu0
    %1416 = vdwg.mxu0
    %1417 = vrot.lane.b32.xlu0 %v171, 40
    %v1418 = vpop.permute.xlu0 %1417
    %v1421 = vsel %vm177, %v1340, 0
    %1423 = vmatprep.subr.mxu0 0.0
    %1424 = vmatpush1.msra.mxu0 0.0
    %1425 = vmatprep.subr.mxu0 0.0
    %1426 = vmatpush1.msra.mxu0 0.0
    %1427 = vmatprep.subr.mxu0 0.0
    %1428 = vmatpush1.msra.mxu0 0.0
    %1429 = vmatprep.subr.mxu0 0.0
    %1430 = vmatpush1.msra.mxu0 0.0
    %1431 = vmatprep.subr.mxu0 0.0
    %1432 = vmatpush1.msra.mxu0 0.0
    %1433 = vmatprep.subr.mxu0 0.0
    %1434 = vmatpush1.msra.mxu0 0.0
    %1435 = vmatprep.subr.mxu0 0.0
    %1436 = vmatpush1.msra.mxu0 0.0
    %1437 = vmatprep.subr.mxu0 0.0
    %1438 = vmatpush1.msra.mxu0 0.0
    %1439 = vmatprep.subr.mxu0 0.0
    %1440 = vmatpush1.msra.mxu0 0.0
    %1441 = vmatprep.subr.mxu0 0.0
    %1442 = vmatpush1.msra.mxu0 0.0
    %1443 = vmatprep.subr.mxu0 0.0
    %1444 = vmatpush1.msra.mxu0 0.0
    %1445 = vmatprep.subr.mxu0 0.0
    %1446 = vmatpush1.msra.mxu0 0.0
    %1447 = vmatprep.subr.mxu0 0.0
    %1448 = vmatpush1.msra.mxu0 0.0
    %1449 = vmatprep.subr.mxu0 0.0
    %1450 = vmatpush1.msra.mxu0 0.0
    %1451 = vmatprep.subr.mxu0 0.0
    %1452 = vmatpush1.msra.mxu0 0.0
    %1453 = vmatprep.subr.mxu0 0.0
    %1454 = vmatpush1.msra.mxu0 %v1418
    %1455 = vmatprep.subr.mxu0 0.0
    %1456 = vmatpush2.msra.mxu0 0.0
    %1457 = vmatprep.subr.mxu0 0.0
    %1458 = vmatpush2.msra.mxu0 0.0
    %1459 = vmatprep.subr.mxu0 0.0
    %1460 = vmatpush2.msra.mxu0 0.0
    %1461 = vmatprep.subr.mxu0 0.0
    %1462 = vmatpush2.msra.mxu0 0.0
    %1463 = vmatprep.subr.mxu0 0.0
    %1464 = vmatpush2.msra.mxu0 0.0
    %1465 = vmatprep.subr.mxu0 0.0
    %1466 = vmatpush2.msra.mxu0 0.0
    %1467 = vmatprep.subr.mxu0 0.0
    %1468 = vmatpush2.msra.mxu0 0.0
    %1469 = vmatprep.subr.mxu0 0.0
    %1470 = vmatpush2.msra.mxu0 0.0
    %1471 = vmatprep.subr.mxu0 0.0
    %1472 = vmatpush2.msra.mxu0 0.0
    %1473 = vmatprep.subr.mxu0 0.0
    %1474 = vmatpush2.msra.mxu0 0.0
    %1475 = vmatprep.subr.mxu0 0.0
    %1476 = vmatpush2.msra.mxu0 0.0
    %1477 = vmatprep.subr.mxu0 0.0
    %1478 = vmatpush2.msra.mxu0 0.0
    %1479 = vmatprep.subr.mxu0 0.0
    %1480 = vmatpush2.msra.mxu0 0.0
    %1481 = vmatprep.subr.mxu0 0.0
    %1482 = vmatpush2.msra.mxu0 0.0
    %1483 = vmatprep.subr.mxu0 0.0
    %1484 = vmatpush2.msra.mxu0 0.0
    %1485 = vmatprep.subr.mxu0 0.0
    %1486 = vmatpush2.msra.mxu0 0.0
    %1487 = vmatprep.mubr.f32.mxu0 0.0
    %1488 = vmatmul.mubr.f32.gmra.mxu0 %v1421
    %v1489 = vpop.f32.mrf.mxu0
    %v1490 = vadd.f32 0.0, %v1489
    %v1491 = vpop.f32.mrf.mxu0
    %1492 = vdwg.mxu0
    %1495 = vrot.lane.b32.xlu0 %v754, 8
    %v1496 = vpop.permute.xlu0 %1495
    %1497 = vrot.lane.b32.xlu0 %v830, 8
    %v1498 = vpop.permute.xlu0 %1497
    %1503 = vrot.lane.b32.xlu0 %v1084, 16
    %v1504 = vpop.permute.xlu0 %1503
    %1505 = vrot.lane.b32.xlu0 %v1160, 16
    %v1506 = vpop.permute.xlu0 %1505
    %1511 = vrot.lane.b32.xlu0 %v1414, 24
    %v1512 = vpop.permute.xlu0 %1511
    %1513 = vrot.lane.b32.xlu0 %v1490, 24
    %v1514 = vpop.permute.xlu0 %1513
    %v1517 = vsel %vm177, %v424, %v1496
    %v1518 = vsel %vm177, %v500, %v1498
    %vm1519 = vcmask 130048
    %v1520 = vsel %vm1519, %v1517, %v1504
    %v1521 = vsel %vm1519, %v1518, %v1506
    %vm1522 = vcmask 195584
    %v1523 = vsel %vm1522, %v1520, %v1512
    %v1524 = vsel %vm1522, %v1521, %v1514
    %v1525 = vld [vmem:[#allocation7] sm:$0xff]
    %v1526 = vld [vmem:[#allocation7 + $0x8] sm:$0xff]
    %v1527 = vld [vmem:[#allocation7 + $0x10] sm:$0xff]
    %v1528 = vld [vmem:[#allocation7 + $0x18] sm:$0xff]
    %v1529 = vld [vmem:[%s4] sm:$0x1]
    %v1531 = vlaneseq
    %v1532 = vshrl.u32 %v1531, 7
    %v1533 = vsub.s32 0, %v1532
    %v1534 = vrot.slane %v1529, %v1533
    %v1537 = vsel %vm92, %v1523, 0
    %v1540 = vsel %vm92, %v1524, 0
    %1542 = vmatprep.subr.mxu0 0.0
    %1543 = vmatpush1.msra.mxu0 0.0
    %1544 = vmatprep.subr.mxu0 0.0
    %1545 = vmatpush1.msra.mxu0 0.0
    %1546 = vmatprep.subr.mxu0 0.0
    %1547 = vmatpush1.msra.mxu0 0.0
    %1548 = vmatprep.subr.mxu0 0.0
    %1549 = vmatpush1.msra.mxu0 0.0
    %1550 = vmatprep.subr.mxu0 0.0
    %1551 = vmatpush1.msra.mxu0 0.0
    %1552 = vmatprep.subr.mxu0 0.0
    %1553 = vmatpush1.msra.mxu0 0.0
    %1554 = vmatprep.subr.mxu0 0.0
    %1555 = vmatpush1.msra.mxu0 0.0
    %1556 = vmatprep.subr.mxu0 0.0
    %1557 = vmatpush1.msra.mxu0 0.0
    %1558 = vmatprep.subr.mxu0 0.0
    %1559 = vmatpush1.msra.mxu0 0.0
    %1560 = vmatprep.subr.mxu0 0.0
    %1561 = vmatpush1.msra.mxu0 0.0
    %1562 = vmatprep.subr.mxu0 0.0
    %1563 = vmatpush1.msra.mxu0 0.0
    %1564 = vmatprep.subr.mxu0 0.0
    %1565 = vmatpush1.msra.mxu0 0.0
    %1566 = vmatprep.subr.mxu0 0.0
    %1567 = vmatpush1.msra.mxu0 %v1528
    %1568 = vmatprep.subr.mxu0 0.0
    %1569 = vmatpush1.msra.mxu0 %v1527
    %1570 = vmatprep.subr.mxu0 0.0
    %1571 = vmatpush1.msra.mxu0 %v1526
    %1572 = vmatprep.subr.mxu0 0.0
    %1573 = vmatpush1.msra.mxu0 %v1525
    %1574 = vmatprep.subr.mxu0 0.0
    %1575 = vmatpush2.msra.mxu0 0.0
    %1576 = vmatprep.subr.mxu0 0.0
    %1577 = vmatpush2.msra.mxu0 0.0
    %1578 = vmatprep.subr.mxu0 0.0
    %1579 = vmatpush2.msra.mxu0 0.0
    %1580 = vmatprep.subr.mxu0 0.0
    %1581 = vmatpush2.msra.mxu0 0.0
    %1582 = vmatprep.subr.mxu0 0.0
    %1583 = vmatpush2.msra.mxu0 0.0
    %1584 = vmatprep.subr.mxu0 0.0
    %1585 = vmatpush2.msra.mxu0 0.0
    %1586 = vmatprep.subr.mxu0 0.0
    %1587 = vmatpush2.msra.mxu0 0.0
    %1588 = vmatprep.subr.mxu0 0.0
    %1589 = vmatpush2.msra.mxu0 0.0
    %1590 = vmatprep.subr.mxu0 0.0
    %1591 = vmatpush2.msra.mxu0 0.0
    %1592 = vmatprep.subr.mxu0 0.0
    %1593 = vmatpush2.msra.mxu0 0.0
    %1594 = vmatprep.subr.mxu0 0.0
    %1595 = vmatpush2.msra.mxu0 0.0
    %1596 = vmatprep.subr.mxu0 0.0
    %1597 = vmatpush2.msra.mxu0 0.0
    %1598 = vmatprep.subr.mxu0 0.0
    %1599 = vmatpush2.msra.mxu0 0.0
    %1600 = vmatprep.subr.mxu0 0.0
    %1601 = vmatpush2.msra.mxu0 0.0
    %1602 = vmatprep.subr.mxu0 0.0
    %1603 = vmatpush2.msra.mxu0 0.0
    %1604 = vmatprep.subr.mxu0 0.0
    %1605 = vmatpush2.msra.mxu0 0.0
    %1606 = vmatprep.mubr.f32.mxu0 0.0
    %1607 = vmatmul.mubr.f32.gmra.mxu0 %v1537
    %v1608 = vpop.f32.mrf.mxu0
    %v1609 = vadd.f32 %v1534, %v1608
    %v1610 = vpop.f32.mrf.mxu0
    %1611 = vmatprep.mubr.f32.mxu0 0.0
    %1612 = vmatmul.mubr.f32.gmra.mxu0 %v1540
    %v1613 = vpop.f32.mrf.mxu0
    %v1614 = vadd.f32 %v1534, %v1613
    %v1615 = vpop.f32.mrf.mxu0
    %1616 = vdwg.mxu0
    %v1617 = vadd.f32 %v1609, %v79
    %v1618 = vadd.f32 %v1614, %v80
    %v1619 = vld [vmem:[#allocation8] sm:$0xff]
    %v1620 = vld [vmem:[#allocation8 + $0x8] sm:$0xff]
    %v1621 = vld [vmem:[#allocation8 + $0x10] sm:$0xff]
    %v1622 = vld [vmem:[#allocation8 + $0x18] sm:$0xff]
    %v1624 = vsel %vm92, %v1617, 0
    %v1627 = vsel %vm92, %v1618, 0
    %1629 = vmatprep.subr.mxu0 0.0
    %1630 = vmatpush1.msra.mxu0 0.0
    %1631 = vmatprep.subr.mxu0 0.0
    %1632 = vmatpush1.msra.mxu0 0.0
    %1633 = vmatprep.subr.mxu0 0.0
    %1634 = vmatpush1.msra.mxu0 0.0
    %1635 = vmatprep.subr.mxu0 0.0
    %1636 = vmatpush1.msra.mxu0 0.0
    %1637 = vmatprep.subr.mxu0 0.0
    %1638 = vmatpush1.msra.mxu0 0.0
    %1639 = vmatprep.subr.mxu0 0.0
    %1640 = vmatpush1.msra.mxu0 0.0
    %1641 = vmatprep.subr.mxu0 0.0
    %1642 = vmatpush1.msra.mxu0 0.0
    %1643 = vmatprep.subr.mxu0 0.0
    %1644 = vmatpush1.msra.mxu0 0.0
    %1645 = vmatprep.subr.mxu0 0.0
    %1646 = vmatpush1.msra.mxu0 0.0
    %1647 = vmatprep.subr.mxu0 0.0
    %1648 = vmatpush1.msra.mxu0 0.0
    %1649 = vmatprep.subr.mxu0 0.0
    %1650 = vmatpush1.msra.mxu0 0.0
    %1651 = vmatprep.subr.mxu0 0.0
    %1652 = vmatpush1.msra.mxu0 0.0
    %1653 = vmatprep.subr.mxu0 0.0
    %1654 = vmatpush1.msra.mxu0 %v1622
    %1655 = vmatprep.subr.mxu0 0.0
    %1656 = vmatpush1.msra.mxu0 %v1621
    %1657 = vmatprep.subr.mxu0 0.0
    %1658 = vmatpush1.msra.mxu0 %v1620
    %1659 = vmatprep.subr.mxu0 0.0
    %1660 = vmatpush1.msra.mxu0 %v1619
    %1661 = vmatprep.subr.mxu0 0.0
    %1662 = vmatpush2.msra.mxu0 0.0
    %1663 = vmatprep.subr.mxu0 0.0
    %1664 = vmatpush2.msra.mxu0 0.0
    %1665 = vmatprep.subr.mxu0 0.0
    %1666 = vmatpush2.msra.mxu0 0.0
    %1667 = vmatprep.subr.mxu0 0.0
    %1668 = vmatpush2.msra.mxu0 0.0
    %1669 = vmatprep.subr.mxu0 0.0
    %1670 = vmatpush2.msra.mxu0 0.0
    %1671 = vmatprep.subr.mxu0 0.0
    %1672 = vmatpush2.msra.mxu0 0.0
    %1673 = vmatprep.subr.mxu0 0.0
    %1674 = vmatpush2.msra.mxu0 0.0
    %1675 = vmatprep.subr.mxu0 0.0
    %1676 = vmatpush2.msra.mxu0 0.0
    %1677 = vmatprep.subr.mxu0 0.0
    %1678 = vmatpush2.msra.mxu0 0.0
    %1679 = vmatprep.subr.mxu0 0.0
    %1680 = vmatpush2.msra.mxu0 0.0
    %1681 = vmatprep.subr.mxu0 0.0
    %1682 = vmatpush2.msra.mxu0 0.0
    %1683 = vmatprep.subr.mxu0 0.0
    %1684 = vmatpush2.msra.mxu0 0.0
    %1685 = vmatprep.subr.mxu0 0.0
    %1686 = vmatpush2.msra.mxu0 0.0
    %1687 = vmatprep.subr.mxu0 0.0
    %1688 = vmatpush2.msra.mxu0 0.0
    %1689 = vmatprep.subr.mxu0 0.0
    %1690 = vmatpush2.msra.mxu0 0.0
    %1691 = vmatprep.subr.mxu0 0.0
    %1692 = vmatpush2.msra.mxu0 0.0
    %1693 = vmatprep.mubr.f32.mxu0 0.0
    %1694 = vmatmul.mubr.f32.gmra.mxu0 %v1624
    %v1695 = vpop.f32.mrf.mxu0
    %v1696 = vadd.f32 %v1617, %v1695
    %v1697 = vpop.f32.mrf.mxu0
    %1698 = vmatprep.mubr.f32.mxu0 0.0
    %1699 = vmatmul.mubr.f32.gmra.mxu0 %v1627
    %v1700 = vpop.f32.mrf.mxu0
    %v1701 = vadd.f32 %v1618, %v1700
    %v1702 = vpop.f32.mrf.mxu0
    %1703 = vdwg.mxu0
    %1704 = vst.msk [vmem:[#allocation10] sm:$0xff] %vm92, %v1696
    %1705 = vst.msk [vmem:[#allocation10 + $0x8] sm:$0xff] %vm92, %v1701
    // Predicated region
    $region42: #{tpu_custom_call.1} parent=1 // pred_check
      _
    $region43: #{tpu_custom_call.1} parent=1 // pred_check_branch
      %1707 = sbr.rel (0) target = $region45
    $region44: #{tpu_custom_call.1} parent=1 // pred_region
      %s1709 = ssub.s32 256, 256
      %1710 = vsyncadd [#allocation4], %s1709
      %s1711 = sshll.u32 [#allocation10], 4
      %s1712 = int_to_ptr.vmem [resolvable:$true] %s1711
      %1717 = dma.vmem_to_hbm [thread:$0]  %s1712, 256, %s6, [#allocation4], 128, 128, 8
    $region45: #{tpu_custom_call.1} parent=1 // pred_fallthru
      _
    // Predicated region
    $region46: #{tpu_custom_call.1} parent=1 // pred_check
      _
    $region47: #{tpu_custom_call.1} parent=1 // pred_check_branch
      %1719 = sbr.rel (0) target = $region49
    $region48: #{tpu_custom_call.1} parent=1 // pred_region
      %1720 = dma.done [#allocation4], 256
    $region49: #{tpu_custom_call.1} parent=1 // pred_fallthru
      _
    %1721 = vsyncpa [#allocation3], 1
    %1722 = vsyncpa [#allocation6], 1
    %1723 = vsyncpa [#allocation9], 1
    %1724 = vsyncpa [#allocation4], 1

</llo_original>
